<compile_context>
chip_gen: v7x
topology: tpu7x:2x2x1
jax: 0.10.0
libtpu: 0.0.40
codegen_flags: <defaults>
</compile_context>

<pallas_src>
import functools

import jax
import jax.numpy as jnp
import numpy as np
from jax.experimental import pallas as pl
from jax.experimental.pallas import tpu as pltpu


# ----------------------------- config ---------------------------------------
class Config:
    n_enc_vocab = 64
    n_enc_seq = 8          # sequence length
    n_seg_type = 2
    d_hidn = 32
    n_head = 4
    d_head = 8
    d_ff = 64
    n_layer = 2
    dropout = 0.0          # eval mode -> dropout is identity
    layer_norm_epsilon = 1e-12
    i_pad = 0


cfg = Config()


# --------------------------- kernel helpers ----------------------------------
def _layer_norm(x, g, b, eps):
    mu = jnp.mean(x, axis=-1, keepdims=True)
    var = jnp.mean((x - mu) ** 2, axis=-1, keepdims=True)
    return (x - mu) * jax.lax.rsqrt(var + eps) * g + b


# ----------------------- fused encoder-stack kernel ---------------------------
def bert_stack_kernel(x_ref, bias_ref,
                      wqkv_ref, bqkv_ref, wo_ref, bo_ref,
                      g1_ref, be1_ref, w1_ref, b1_ref, w2_ref, b2_ref,
                      g2_ref, be2_ref, clsw_ref, clsb_ref,
                      out_ref, cls_ref, ap_ref,
                      *, n_head, d_head, n_seq, n_batch, eps):
    l = pl.program_id(0)
    H, Dh, S, B = n_head, d_head, n_seq, n_batch
    hdh = H * Dh
    scale = 1.0 / (d_head ** 0.5)

    # Layer 0: seed the resident activation buffer from the embedding output.
    @pl.when(l == 0)
    def _():
        out_ref[...] = x_ref[...]

    x = out_ref[...]                                   # (B*S, D) carried across layers

    # Fused QKV projection: one MXU matmul instead of three.
    qkv = jnp.dot(x, wqkv_ref[0], preferred_element_type=jnp.float32) + bqkv_ref[0]
    q = qkv[:, :hdh]
    k = qkv[:, hdh:2 * hdh]
    v = qkv[:, 2 * hdh:]

    # Additive bias (B*S, B*S): -1e9 on cross-batch keys and pad keys.
    bias = bias_ref[...]

    head_ctx = []
    for h in range(H):                                 # static, small head count
        cols = slice(h * Dh, (h + 1) * Dh)
        qh, kh, vh = q[:, cols], k[:, cols], v[:, cols]
        scores = jnp.dot(qh, kh.T, preferred_element_type=jnp.float32) * scale + bias
        m = jnp.max(scores, axis=-1, keepdims=True)
        e = jnp.exp(scores - m)
        p = e * pl.reciprocal(jnp.sum(e, axis=-1, keepdims=True), approx=True)
        ap_ref[0, h] = p                               # (B*S, B*S) slab, one store per head
        head_ctx.append(jnp.dot(p, vh, preferred_element_type=jnp.float32))
    ctx = jnp.concatenate(head_ctx, axis=-1)           # (B*S, H*Dh)

    att = jnp.dot(ctx, wo_ref[0], preferred_element_type=jnp.float32) + bo_ref[0]
    x1 = _layer_norm(att + x, g1_ref[0], be1_ref[0], eps)

    h1 = jnp.maximum(
        jnp.dot(x1, w1_ref[0], preferred_element_type=jnp.float32) + b1_ref[0], 0.0)
    ffn = jnp.dot(h1, w2_ref[0], preferred_element_type=jnp.float32) + b2_ref[0]
    x_new = _layer_norm(ffn + x1, g2_ref[0], be2_ref[0], eps)
    out_ref[...] = x_new                               # carry to next layer / final output

    # CLS head fused into the last layer (x_new is already in VMEM).
    @pl.when(l == pl.num_programs(0) - 1)
    def _():
        cls_rows = jnp.concatenate(
            [x_new[b * S:b * S + 1, :] for b in range(B)], axis=0)     # (B, D)
        cls_ref[...] = jnp.tanh(
            jnp.dot(cls_rows, clsw_ref[...], preferred_element_type=jnp.float32)
            + clsb_ref[...])


# ------------------------------ parameters -----------------------------------
def init_params(key, cfg):
    def nrm(k, shape, scale=0.02):
        return (scale * jax.random.normal(k, shape)).astype(jnp.float32)

    keys = iter(jax.random.split(key, 256))
    D, H, Dh, F = cfg.d_hidn, cfg.n_head, cfg.d_head, cfg.d_ff
    params = {
        "enc_emb": nrm(next(keys), (cfg.n_enc_vocab, D)),
        "pos_emb": nrm(next(keys), (cfg.n_enc_seq + 1, D)),
        "seg_emb": nrm(next(keys), (cfg.n_seg_type, D)),
        "cls_w": nrm(next(keys), (D, D)),
        "cls_b": nrm(next(keys), (1, D)),
        "layers": [],
    }
    for _ in range(cfg.n_layer):
        params["layers"].append(dict(
            wq=nrm(next(keys), (D, H * Dh)), bq=nrm(next(keys), (1, H * Dh)),
            wk=nrm(next(keys), (D, H * Dh)), bk=nrm(next(keys), (1, H * Dh)),
            wv=nrm(next(keys), (D, H * Dh)), bv=nrm(next(keys), (1, H * Dh)),
            wo=nrm(next(keys), (H * Dh, D)), bo=nrm(next(keys), (1, D)),
            g1=(1.0 + nrm(next(keys), (1, D))), be1=nrm(next(keys), (1, D)),
            w1=nrm(next(keys), (D, F)), b1=nrm(next(keys), (1, F)),
            w2=nrm(next(keys), (F, D)), b2=nrm(next(keys), (1, D)),
            g2=(1.0 + nrm(next(keys), (1, D))), be2=nrm(next(keys), (1, D)),
        ))
    return params


# ------------------------------ full forward ----------------------------------
def bert_forward(params, inputs, segments, cfg):
    B, S = inputs.shape
    D, H, Dh, F, L = cfg.d_hidn, cfg.n_head, cfg.d_head, cfg.d_ff, cfg.n_layer
    BS = B * S

    # Embedding gathers stay in JAX glue (pure table lookups).
    positions = (jnp.arange(S, dtype=inputs.dtype)[None, :] + 1) * (inputs != cfg.i_pad)
    x = (params["enc_emb"][inputs]
         + params["pos_emb"][positions]
         + params["seg_emb"][segments]).astype(jnp.float32)
    x2d = x.reshape(BS, D)

    # Block-diagonal additive attention bias, hoisted out of the kernel:
    # -1e9 on cross-batch keys and on pad keys -> batched softmax over B*S keys
    # is exactly equivalent to per-batch masked softmax (masked terms underflow to 0).
    batch_ids = jnp.arange(BS, dtype=jnp.int32) // S
    key_pad = (inputs == cfg.i_pad).reshape(BS)
    masked = (batch_ids[:, None] != batch_ids[None, :]) | key_pad[None, :]
    bias = jnp.where(masked, jnp.float32(-1000000000.0), jnp.float32(0.0))   # (B*S, B*S)

    layers = params["layers"]
    # Pack per-layer weights with a leading layer axis; fuse QKV weights.
    wqkv = jnp.stack([jnp.concatenate([lp["wq"], lp["wk"], lp["wv"]], axis=1)
                      for lp in layers])                                   # (L, D, 3*H*Dh)
    bqkv = jnp.stack([jnp.concatenate([lp["bq"], lp["bk"], lp["bv"]], axis=1)
                      for lp in layers])                                   # (L, 1, 3*H*Dh)
    st = lambda n: jnp.stack([lp[n] for lp in layers])
    wo, bo = st("wo"), st("bo")
    g1, be1 = st("g1"), st("be1")
    w1, b1, w2, b2 = st("w1"), st("b1"), st("w2"), st("b2")
    g2, be2 = st("g2"), st("be2")

    kernel = functools.partial(bert_stack_kernel, n_head=H, d_head=Dh, n_seq=S,
                               n_batch=B, eps=cfg.layer_norm_epsilon)

    def const_spec(shape):
        return pl.BlockSpec(shape, lambda l, _n=len(shape): (0,) * _n)

    def per_layer(shape):
        return pl.BlockSpec((1,) + shape, lambda l, _n=len(shape): (l,) + (0,) * _n)

    in_specs = [
        const_spec((BS, D)),                                  # x (embeddings)
        const_spec((BS, BS)),                                 # block-diagonal mask bias
        per_layer((D, 3 * H * Dh)), per_layer((1, 3 * H * Dh)),   # wqkv, bqkv
        per_layer((H * Dh, D)), per_layer((1, D)),            # wo, bo
        per_layer((1, D)), per_layer((1, D)),                 # ln1 gamma, beta
        per_layer((D, F)), per_layer((1, F)),                 # ffn W1, b1
        per_layer((F, D)), per_layer((1, D)),                 # ffn W2, b2
        per_layer((1, D)), per_layer((1, D)),                 # ln2 gamma, beta
        const_spec((D, D)), const_spec((1, D)),               # CLS head W, b
    ]
    out_specs = (
        const_spec((BS, D)),                                  # final activations (resident)
        const_spec((B, D)),                                   # CLS output (resident)
        pl.BlockSpec((1, H, BS, BS), lambda l: (l, 0, 0, 0)),  # attn probs per layer (batched)
    )
    out_shape = (
        jax.ShapeDtypeStruct((BS, D), jnp.float32),
        jax.ShapeDtypeStruct((B, D), jnp.float32),
        jax.ShapeDtypeStruct((L, H, BS, BS), jnp.float32),
    )

    out2d, cls, ap = pl.pallas_call(
        kernel,
        grid=(L,),
        in_specs=in_specs,
        out_specs=out_specs,
        out_shape=out_shape,
        compiler_params=pltpu.CompilerParams(dimension_semantics=("arbitrary",)),
    )(x2d, bias, wqkv, bqkv, wo, bo, g1, be1, w1, b1, w2, b2, g2, be2,
      params["cls_w"], params["cls_b"])

    outputs = out2d.reshape(B, S, D)
    # Slice the per-batch (S, S) diagonal blocks out of the batched probs (JAX glue).
    attn_probs = []
    for l in range(L):
        layer_p = jnp.stack(
            [ap[l, :, b * S:(b + 1) * S, b * S:(b + 1) * S] for b in range(B)], axis=0)
        attn_probs.append(layer_p)                            # (B, H, S, S)
    return outputs, cls, attn_probs


# --------------------------- pure-JAX reference --------------------------------
def _ref_ln(x, g, b, eps):
    mu = jnp.mean(x, axis=-1, keepdims=True)
    var = jnp.mean((x - mu) ** 2, axis=-1, keepdims=True)
    return (x - mu) / jnp.sqrt(var + eps) * g + b


def ref_forward(params, inputs, segments, cfg):
    B, S = inputs.shape
    D, H, Dh = cfg.d_hidn, cfg.n_head, cfg.d_head
    positions = (jnp.arange(S, dtype=inputs.dtype)[None, :] + 1) * (inputs != cfg.i_pad)
    x = (params["enc_emb"][inputs] + params["pos_emb"][positions]
         + params["seg_emb"][segments]).astype(jnp.float32)
    key_pad = (inputs == cfg.i_pad)                                    # (B, S)
    attn_probs = []
    for lp in params["layers"]:
        q = (x @ lp["wq"] + lp["bq"]).reshape(B, S, H, Dh).transpose(0, 2, 1, 3)
        k = (x @ lp["wk"] + lp["bk"]).reshape(B, S, H, Dh).transpose(0, 2, 1, 3)
        v = (x @ lp["wv"] + lp["bv"]).reshape(B, S, H, Dh).transpose(0, 2, 1, 3)
        scores = jnp.einsum("bhqd,bhkd->bhqk", q, k) * (1.0 / Dh ** 0.5)
        scores = jnp.where(key_pad[:, None, None, :], -1000000000.0, scores)
        p = jax.nn.softmax(scores, axis=-1)
        ctx = jnp.einsum("bhqk,bhkd->bhqd", p, v).transpose(0, 2, 1, 3).reshape(B, S, H * Dh)
        att = ctx @ lp["wo"] + lp["bo"]
        x1 = _ref_ln(att + x, lp["g1"], lp["be1"], cfg.layer_norm_epsilon)
        ffn = jax.nn.relu(x1 @ lp["w1"] + lp["b1"]) @ lp["w2"] + lp["b2"]
        x = _ref_ln(ffn + x1, lp["g2"], lp["be2"], cfg.layer_norm_epsilon)
        attn_probs.append(p)
    cls = jnp.tanh(x[:, 0, :] @ params["cls_w"] + params["cls_b"])
    return x, cls, attn_probs


# ---------------------------------- main ---------------------------------------
if __name__ == "__main__":
    key = jax.random.PRNGKey(0)
    k_param, k_inp, k_seg = jax.random.split(key, 3)

    B, S = 2, cfg.n_enc_seq
    params = init_params(k_param, cfg)

    inputs = jax.random.randint(k_inp, (B, S), 1, cfg.n_enc_vocab, dtype=jnp.int32)
    inputs = inputs.at[:, -2:].set(cfg.i_pad)        # force some pad tokens
    segments = jax.random.randint(k_seg, (B, S), 0, cfg.n_seg_type, dtype=jnp.int32)

    outputs, outputs_cls, attn_probs = bert_forward(params, inputs, segments, cfg)
    jax.block_until_ready((outputs, outputs_cls, attn_probs))

    # sanity check against pure-JAX reference
    r_out, r_cls, r_probs = ref_forward(params, inputs, segments, cfg)
    np.testing.assert_allclose(np.asarray(outputs), np.asarray(r_out), rtol=2e-3, atol=2e-3)
    np.testing.assert_allclose(np.asarray(outputs_cls), np.asarray(r_cls), rtol=2e-3, atol=2e-3)
    for a, b in zip(attn_probs, r_probs):
        np.testing.assert_allclose(np.asarray(a), np.asarray(b), rtol=2e-3, atol=2e-3)

    # TODO(synk): dropout is identity (eval mode); torch save/load checkpointing not ported.
    print("KERNEL_OK")
</pallas_src>

<mosaic_0001>
module attributes {stable_mosaic.version = 11 : i64} {
  func.func @bert_stack_kernel(%arg0: i32, %arg1: memref<16x32xf32, #tpu.memory_space<vmem>>, %arg2: memref<16x16xf32, #tpu.memory_space<vmem>>, %arg3: memref<1x32x96xf32, #tpu.memory_space<vmem>>, %arg4: memref<1x1x96xf32, #tpu.memory_space<vmem>>, %arg5: memref<1x32x32xf32, #tpu.memory_space<vmem>>, %arg6: memref<1x1x32xf32, #tpu.memory_space<vmem>>, %arg7: memref<1x1x32xf32, #tpu.memory_space<vmem>>, %arg8: memref<1x1x32xf32, #tpu.memory_space<vmem>>, %arg9: memref<1x32x64xf32, #tpu.memory_space<vmem>>, %arg10: memref<1x1x64xf32, #tpu.memory_space<vmem>>, %arg11: memref<1x64x32xf32, #tpu.memory_space<vmem>>, %arg12: memref<1x1x32xf32, #tpu.memory_space<vmem>>, %arg13: memref<1x1x32xf32, #tpu.memory_space<vmem>>, %arg14: memref<1x1x32xf32, #tpu.memory_space<vmem>>, %arg15: memref<32x32xf32, #tpu.memory_space<vmem>>, %arg16: memref<1x32xf32, #tpu.memory_space<vmem>>, %arg17: memref<16x32xf32, #tpu.memory_space<vmem>>, %arg18: memref<2x32xf32, #tpu.memory_space<vmem>>, %arg19: memref<1x4x16x16xf32, #tpu.memory_space<vmem>>) attributes {dimension_semantics = [#tpu.dimension_semantics<arbitrary>], iteration_bounds = array<i64: 2>, scalar_prefetch = 0 : i64, scratch_operands = 0 : i64, tpu.core_type = #tpu.core_type<tc>, window_params = [{pipeline_mode = #tpu.pipeline_mode<synchronous>, transform_indices = @transform_0, window_bounds = array<i64: 16, 32>}, {pipeline_mode = #tpu.pipeline_mode<synchronous>, transform_indices = @transform_1, window_bounds = array<i64: 16, 16>}, {transform_indices = @transform_2, window_bounds = array<i64: 1, 32, 96>}, {transform_indices = @transform_3, window_bounds = array<i64: 1, 1, 96>}, {transform_indices = @transform_4, window_bounds = array<i64: 1, 32, 32>}, {transform_indices = @transform_5, window_bounds = array<i64: 1, 1, 32>}, {transform_indices = @transform_6, window_bounds = array<i64: 1, 1, 32>}, {transform_indices = @transform_7, window_bounds = array<i64: 1, 1, 32>}, {transform_indices = @transform_8, window_bounds = array<i64: 1, 32, 64>}, {transform_indices = @transform_9, window_bounds = array<i64: 1, 1, 64>}, {transform_indices = @transform_10, window_bounds = array<i64: 1, 64, 32>}, {transform_indices = @transform_11, window_bounds = array<i64: 1, 1, 32>}, {transform_indices = @transform_12, window_bounds = array<i64: 1, 1, 32>}, {transform_indices = @transform_13, window_bounds = array<i64: 1, 1, 32>}, {pipeline_mode = #tpu.pipeline_mode<synchronous>, transform_indices = @transform_14, window_bounds = array<i64: 32, 32>}, {pipeline_mode = #tpu.pipeline_mode<synchronous>, transform_indices = @transform_15, window_bounds = array<i64: 1, 32>}, {pipeline_mode = #tpu.pipeline_mode<synchronous>, transform_indices = @transform_16, window_bounds = array<i64: 16, 32>}, {pipeline_mode = #tpu.pipeline_mode<synchronous>, transform_indices = @transform_17, window_bounds = array<i64: 2, 32>}, {transform_indices = @transform_18, window_bounds = array<i64: 1, 4, 16, 16>}]} {
    %c0_i32 = arith.constant 0 : i32
    %0 = arith.cmpi eq, %arg0, %c0_i32 : i32
    %1 = arith.extui %0 : i1 to i32
    %c0_i32_0 = arith.constant 0 : i32
    %2 = arith.cmpi ne, %1, %c0_i32_0 : i32
    scf.if %2 {
      %c0_90 = arith.constant 0 : index
      %c0_91 = arith.constant 0 : index
      %185 = vector.load %arg1[%c0_90, %c0_91] : memref<16x32xf32, #tpu.memory_space<vmem>>, vector<16x32xf32>
      %c0_92 = arith.constant 0 : index
      %c0_93 = arith.constant 0 : index
      %186 = vector.load %arg17[%c0_92, %c0_93] : memref<16x32xf32, #tpu.memory_space<vmem>>, vector<16x32xf32>
      tpu.vector_store %arg17[%c0_92, %c0_93], %185 {strides = array<i32>} : memref<16x32xf32, #tpu.memory_space<vmem>>, vector<16x32xf32>,
    } else {
    }
    %c0 = arith.constant 0 : index
    %c0_1 = arith.constant 0 : index
    %3 = vector.load %arg17[%c0, %c0_1] : memref<16x32xf32, #tpu.memory_space<vmem>>, vector<16x32xf32>
    %c0_2 = arith.constant 0 : index
    %c0_3 = arith.constant 0 : index
    %c0_4 = arith.constant 0 : index
    %4 = vector.load %arg3[%c0_2, %c0_3, %c0_4] : memref<1x32x96xf32, #tpu.memory_space<vmem>>, vector<1x32x96xf32>
    %5 = vector.shape_cast %4 : vector<1x32x96xf32> to vector<32x96xf32>
    %cst = arith.constant dense<0.000000e+00> : vector<16x96xf32>
    %6 = tpu.matmul %3, %5, %cst {dimension_numbers = #tpu.dot_dimension_numbers<[1], [0], [0], [1], [0, 0, 1, 1], [], []>} : vector<16x32xf32>, vector<32x96xf32>, vector<16x96xf32> -> vector<16x96xf32>
    %c0_5 = arith.constant 0 : index
    %c0_6 = arith.constant 0 : index
    %c0_7 = arith.constant 0 : index
    %7 = vector.load %arg4[%c0_5, %c0_6, %c0_7] : memref<1x1x96xf32, #tpu.memory_space<vmem>>, vector<1x1x96xf32>
    %8 = vector.shape_cast %7 : vector<1x1x96xf32> to vector<1x96xf32>
    %9 = vector.broadcast %8 : vector<1x96xf32> to vector<16x96xf32>
    %10 = arith.addf %6, %9 : vector<16x96xf32>
    %11 = vector.extract_strided_slice %10 {offsets = [0, 0], sizes = [16, 32], strides = [1, 1]} : vector<16x96xf32> to vector<16x32xf32>
    %12 = vector.extract_strided_slice %10 {offsets = [0, 32], sizes = [16, 32], strides = [1, 1]} : vector<16x96xf32> to vector<16x32xf32>
    %13 = vector.extract_strided_slice %10 {offsets = [0, 64], sizes = [16, 32], strides = [1, 1]} : vector<16x96xf32> to vector<16x32xf32>
    %c0_8 = arith.constant 0 : index
    %c0_9 = arith.constant 0 : index
    %14 = vector.load %arg2[%c0_8, %c0_9] : memref<16x16xf32, #tpu.memory_space<vmem>>, vector<16x16xf32>
    %15 = vector.extract_strided_slice %11 {offsets = [0, 0], sizes = [16, 8], strides = [1, 1]} : vector<16x32xf32> to vector<16x8xf32>
    %16 = vector.extract_strided_slice %12 {offsets = [0, 0], sizes = [16, 8], strides = [1, 1]} : vector<16x32xf32> to vector<16x8xf32>
    %17 = vector.extract_strided_slice %13 {offsets = [0, 0], sizes = [16, 8], strides = [1, 1]} : vector<16x32xf32> to vector<16x8xf32>
    %18 = tpu.transpose %16, [1, 0] : vector<16x8xf32> -> vector<8x16xf32>
    %cst_10 = arith.constant dense<0.000000e+00> : vector<16x16xf32>
    %19 = tpu.matmul %15, %18, %cst_10 {dimension_numbers = #tpu.dot_dimension_numbers<[1], [0], [0], [1], [0, 0, 1, 1], [], []>} : vector<16x8xf32>, vector<8x16xf32>, vector<16x16xf32> -> vector<16x16xf32>
    %cst_11 = arith.constant 0.353553385 : f32
    %20 = vector.broadcast %cst_11 : f32 to vector<16x16xf32>
    %21 = arith.mulf %19, %20 : vector<16x16xf32>
    %22 = arith.addf %21, %14 : vector<16x16xf32>
    %cst_12 = arith.constant dense<0xFF800000> : vector<16xf32>
    %23 = vector.multi_reduction <maximumf>, %22, %cst_12 [1] : vector<16x16xf32> to vector<16xf32>
    %24 = vector.shape_cast %23 : vector<16xf32> to vector<16x1xf32>
    %25 = vector.broadcast %24 : vector<16x1xf32> to vector<16x16xf32>
    %26 = arith.subf %22, %25 : vector<16x16xf32>
    %27 = math.exp %26 : vector<16x16xf32>
    %cst_13 = arith.constant dense<0.000000e+00> : vector<16xf32>
    %28 = vector.multi_reduction <add>, %27, %cst_13 [1] : vector<16x16xf32> to vector<16xf32>
    %29 = vector.shape_cast %28 : vector<16xf32> to vector<16x1xf32>
    %30 = tpu.reciprocal %29 {approx = true} : vector<16x1xf32> -> vector<16x1xf32>
    %31 = vector.broadcast %30 : vector<16x1xf32> to vector<16x16xf32>
    %32 = arith.mulf %27, %31 : vector<16x16xf32>
    %c0_14 = arith.constant 0 : index
    %c0_15 = arith.constant 0 : index
    %c0_16 = arith.constant 0 : index
    %c0_17 = arith.constant 0 : index
    %33 = vector.load %arg19[%c0_14, %c0_15, %c0_16, %c0_17] : memref<1x4x16x16xf32, #tpu.memory_space<vmem>>, vector<1x1x16x16xf32>
    %34 = vector.shape_cast %33 : vector<1x1x16x16xf32> to vector<16x16xf32>
    %35 = vector.shape_cast %32 : vector<16x16xf32> to vector<1x1x16x16xf32>
    tpu.vector_store %arg19[%c0_14, %c0_15, %c0_16, %c0_17], %35 {strides = array<i32>} : memref<1x4x16x16xf32, #tpu.memory_space<vmem>>, vector<1x1x16x16xf32>,
    %cst_18 = arith.constant dense<0.000000e+00> : vector<16x8xf32>
    %36 = tpu.matmul %32, %17, %cst_18 {dimension_numbers = #tpu.dot_dimension_numbers<[1], [0], [0], [1], [0, 0, 1, 1], [], []>} : vector<16x16xf32>, vector<16x8xf32>, vector<16x8xf32> -> vector<16x8xf32>
    %37 = vector.extract_strided_slice %11 {offsets = [0, 8], sizes = [16, 8], strides = [1, 1]} : vector<16x32xf32> to vector<16x8xf32>
    %38 = vector.extract_strided_slice %12 {offsets = [0, 8], sizes = [16, 8], strides = [1, 1]} : vector<16x32xf32> to vector<16x8xf32>
    %39 = vector.extract_strided_slice %13 {offsets = [0, 8], sizes = [16, 8], strides = [1, 1]} : vector<16x32xf32> to vector<16x8xf32>
    %40 = tpu.transpose %38, [1, 0] : vector<16x8xf32> -> vector<8x16xf32>
    %cst_19 = arith.constant dense<0.000000e+00> : vector<16x16xf32>
    %41 = tpu.matmul %37, %40, %cst_19 {dimension_numbers = #tpu.dot_dimension_numbers<[1], [0], [0], [1], [0, 0, 1, 1], [], []>} : vector<16x8xf32>, vector<8x16xf32>, vector<16x16xf32> -> vector<16x16xf32>
    %cst_20 = arith.constant 0.353553385 : f32
    %42 = vector.broadcast %cst_20 : f32 to vector<16x16xf32>
    %43 = arith.mulf %41, %42 : vector<16x16xf32>
    %44 = arith.addf %43, %14 : vector<16x16xf32>
    %cst_21 = arith.constant dense<0xFF800000> : vector<16xf32>
    %45 = vector.multi_reduction <maximumf>, %44, %cst_21 [1] : vector<16x16xf32> to vector<16xf32>
    %46 = vector.shape_cast %45 : vector<16xf32> to vector<16x1xf32>
    %47 = vector.broadcast %46 : vector<16x1xf32> to vector<16x16xf32>
    %48 = arith.subf %44, %47 : vector<16x16xf32>
    %49 = math.exp %48 : vector<16x16xf32>
    %cst_22 = arith.constant dense<0.000000e+00> : vector<16xf32>
    %50 = vector.multi_reduction <add>, %49, %cst_22 [1] : vector<16x16xf32> to vector<16xf32>
    %51 = vector.shape_cast %50 : vector<16xf32> to vector<16x1xf32>
    %52 = tpu.reciprocal %51 {approx = true} : vector<16x1xf32> -> vector<16x1xf32>
    %53 = vector.broadcast %52 : vector<16x1xf32> to vector<16x16xf32>
    %54 = arith.mulf %49, %53 : vector<16x16xf32>
    %c0_23 = arith.constant 0 : index
    %c1 = arith.constant 1 : index
    %c0_24 = arith.constant 0 : index
    %c0_25 = arith.constant 0 : index
    %55 = vector.load %arg19[%c0_23, %c1, %c0_24, %c0_25] : memref<1x4x16x16xf32, #tpu.memory_space<vmem>>, vector<1x1x16x16xf32>
    %56 = vector.shape_cast %55 : vector<1x1x16x16xf32> to vector<16x16xf32>
    %57 = vector.shape_cast %54 : vector<16x16xf32> to vector<1x1x16x16xf32>
    tpu.vector_store %arg19[%c0_23, %c1, %c0_24, %c0_25], %57 {strides = array<i32>} : memref<1x4x16x16xf32, #tpu.memory_space<vmem>>, vector<1x1x16x16xf32>,
    %cst_26 = arith.constant dense<0.000000e+00> : vector<16x8xf32>
    %58 = tpu.matmul %54, %39, %cst_26 {dimension_numbers = #tpu.dot_dimension_numbers<[1], [0], [0], [1], [0, 0, 1, 1], [], []>} : vector<16x16xf32>, vector<16x8xf32>, vector<16x8xf32> -> vector<16x8xf32>
    %59 = vector.extract_strided_slice %11 {offsets = [0, 16], sizes = [16, 8], strides = [1, 1]} : vector<16x32xf32> to vector<16x8xf32>
    %60 = vector.extract_strided_slice %12 {offsets = [0, 16], sizes = [16, 8], strides = [1, 1]} : vector<16x32xf32> to vector<16x8xf32>
    %61 = vector.extract_strided_slice %13 {offsets = [0, 16], sizes = [16, 8], strides = [1, 1]} : vector<16x32xf32> to vector<16x8xf32>
    %62 = tpu.transpose %60, [1, 0] : vector<16x8xf32> -> vector<8x16xf32>
    %cst_27 = arith.constant dense<0.000000e+00> : vector<16x16xf32>
    %63 = tpu.matmul %59, %62, %cst_27 {dimension_numbers = #tpu.dot_dimension_numbers<[1], [0], [0], [1], [0, 0, 1, 1], [], []>} : vector<16x8xf32>, vector<8x16xf32>, vector<16x16xf32> -> vector<16x16xf32>
    %cst_28 = arith.constant 0.353553385 : f32
    %64 = vector.broadcast %cst_28 : f32 to vector<16x16xf32>
    %65 = arith.mulf %63, %64 : vector<16x16xf32>
    %66 = arith.addf %65, %14 : vector<16x16xf32>
    %cst_29 = arith.constant dense<0xFF800000> : vector<16xf32>
    %67 = vector.multi_reduction <maximumf>, %66, %cst_29 [1] : vector<16x16xf32> to vector<16xf32>
    %68 = vector.shape_cast %67 : vector<16xf32> to vector<16x1xf32>
    %69 = vector.broadcast %68 : vector<16x1xf32> to vector<16x16xf32>
    %70 = arith.subf %66, %69 : vector<16x16xf32>
    %71 = math.exp %70 : vector<16x16xf32>
    %cst_30 = arith.constant dense<0.000000e+00> : vector<16xf32>
    %72 = vector.multi_reduction <add>, %71, %cst_30 [1] : vector<16x16xf32> to vector<16xf32>
    %73 = vector.shape_cast %72 : vector<16xf32> to vector<16x1xf32>
    %74 = tpu.reciprocal %73 {approx = true} : vector<16x1xf32> -> vector<16x1xf32>
    %75 = vector.broadcast %74 : vector<16x1xf32> to vector<16x16xf32>
    %76 = arith.mulf %71, %75 : vector<16x16xf32>
    %c0_31 = arith.constant 0 : index
    %c2 = arith.constant 2 : index
    %c0_32 = arith.constant 0 : index
    %c0_33 = arith.constant 0 : index
    %77 = vector.load %arg19[%c0_31, %c2, %c0_32, %c0_33] : memref<1x4x16x16xf32, #tpu.memory_space<vmem>>, vector<1x1x16x16xf32>
    %78 = vector.shape_cast %77 : vector<1x1x16x16xf32> to vector<16x16xf32>
    %79 = vector.shape_cast %76 : vector<16x16xf32> to vector<1x1x16x16xf32>
    tpu.vector_store %arg19[%c0_31, %c2, %c0_32, %c0_33], %79 {strides = array<i32>} : memref<1x4x16x16xf32, #tpu.memory_space<vmem>>, vector<1x1x16x16xf32>,
    %cst_34 = arith.constant dense<0.000000e+00> : vector<16x8xf32>
    %80 = tpu.matmul %76, %61, %cst_34 {dimension_numbers = #tpu.dot_dimension_numbers<[1], [0], [0], [1], [0, 0, 1, 1], [], []>} : vector<16x16xf32>, vector<16x8xf32>, vector<16x8xf32> -> vector<16x8xf32>
    %81 = vector.extract_strided_slice %11 {offsets = [0, 24], sizes = [16, 8], strides = [1, 1]} : vector<16x32xf32> to vector<16x8xf32>
    %82 = vector.extract_strided_slice %12 {offsets = [0, 24], sizes = [16, 8], strides = [1, 1]} : vector<16x32xf32> to vector<16x8xf32>
    %83 = vector.extract_strided_slice %13 {offsets = [0, 24], sizes = [16, 8], strides = [1, 1]} : vector<16x32xf32> to vector<16x8xf32>
    %84 = tpu.transpose %82, [1, 0] : vector<16x8xf32> -> vector<8x16xf32>
    %cst_35 = arith.constant dense<0.000000e+00> : vector<16x16xf32>
    %85 = tpu.matmul %81, %84, %cst_35 {dimension_numbers = #tpu.dot_dimension_numbers<[1], [0], [0], [1], [0, 0, 1, 1], [], []>} : vector<16x8xf32>, vector<8x16xf32>, vector<16x16xf32> -> vector<16x16xf32>
    %cst_36 = arith.constant 0.353553385 : f32
    %86 = vector.broadcast %cst_36 : f32 to vector<16x16xf32>
    %87 = arith.mulf %85, %86 : vector<16x16xf32>
    %88 = arith.addf %87, %14 : vector<16x16xf32>
    %cst_37 = arith.constant dense<0xFF800000> : vector<16xf32>
    %89 = vector.multi_reduction <maximumf>, %88, %cst_37 [1] : vector<16x16xf32> to vector<16xf32>
    %90 = vector.shape_cast %89 : vector<16xf32> to vector<16x1xf32>
    %91 = vector.broadcast %90 : vector<16x1xf32> to vector<16x16xf32>
    %92 = arith.subf %88, %91 : vector<16x16xf32>
    %93 = math.exp %92 : vector<16x16xf32>
    %cst_38 = arith.constant dense<0.000000e+00> : vector<16xf32>
    %94 = vector.multi_reduction <add>, %93, %cst_38 [1] : vector<16x16xf32> to vector<16xf32>
    %95 = vector.shape_cast %94 : vector<16xf32> to vector<16x1xf32>
    %96 = tpu.reciprocal %95 {approx = true} : vector<16x1xf32> -> vector<16x1xf32>
    %97 = vector.broadcast %96 : vector<16x1xf32> to vector<16x16xf32>
    %98 = arith.mulf %93, %97 : vector<16x16xf32>
    %c0_39 = arith.constant 0 : index
    %c3 = arith.constant 3 : index
    %c0_40 = arith.constant 0 : index
    %c0_41 = arith.constant 0 : index
    %99 = vector.load %arg19[%c0_39, %c3, %c0_40, %c0_41] : memref<1x4x16x16xf32, #tpu.memory_space<vmem>>, vector<1x1x16x16xf32>
    %100 = vector.shape_cast %99 : vector<1x1x16x16xf32> to vector<16x16xf32>
    %101 = vector.shape_cast %98 : vector<16x16xf32> to vector<1x1x16x16xf32>
    tpu.vector_store %arg19[%c0_39, %c3, %c0_40, %c0_41], %101 {strides = array<i32>} : memref<1x4x16x16xf32, #tpu.memory_space<vmem>>, vector<1x1x16x16xf32>,
    %cst_42 = arith.constant dense<0.000000e+00> : vector<16x8xf32>
    %102 = tpu.matmul %98, %83, %cst_42 {dimension_numbers = #tpu.dot_dimension_numbers<[1], [0], [0], [1], [0, 0, 1, 1], [], []>} : vector<16x16xf32>, vector<16x8xf32>, vector<16x8xf32> -> vector<16x8xf32>
    %103 = tpu.concatenate %36, %58, %80, %102 in 1 : vector<16x8xf32>, vector<16x8xf32>, vector<16x8xf32>, vector<16x8xf32> -> vector<16x32xf32>
    %c0_43 = arith.constant 0 : index
    %c0_44 = arith.constant 0 : index
    %c0_45 = arith.constant 0 : index
    %104 = vector.load %arg5[%c0_43, %c0_44, %c0_45] : memref<1x32x32xf32, #tpu.memory_space<vmem>>, vector<1x32x32xf32>
    %105 = vector.shape_cast %104 : vector<1x32x32xf32> to vector<32x32xf32>
    %cst_46 = arith.constant dense<0.000000e+00> : vector<16x32xf32>
    %106 = tpu.matmul %103, %105, %cst_46 {dimension_numbers = #tpu.dot_dimension_numbers<[1], [0], [0], [1], [0, 0, 1, 1], [], []>} : vector<16x32xf32>, vector<32x32xf32>, vector<16x32xf32> -> vector<16x32xf32>
    %c0_47 = arith.constant 0 : index
    %c0_48 = arith.constant 0 : index
    %c0_49 = arith.constant 0 : index
    %107 = vector.load %arg6[%c0_47, %c0_48, %c0_49] : memref<1x1x32xf32, #tpu.memory_space<vmem>>, vector<1x1x32xf32>
    %108 = vector.shape_cast %107 : vector<1x1x32xf32> to vector<1x32xf32>
    %109 = vector.broadcast %108 : vector<1x32xf32> to vector<16x32xf32>
    %110 = arith.addf %106, %109 : vector<16x32xf32>
    %111 = arith.addf %110, %3 : vector<16x32xf32>
    %c0_50 = arith.constant 0 : index
    %c0_51 = arith.constant 0 : index
    %c0_52 = arith.constant 0 : index
    %112 = vector.load %arg7[%c0_50, %c0_51, %c0_52] : memref<1x1x32xf32, #tpu.memory_space<vmem>>, vector<1x1x32xf32>
    %113 = vector.shape_cast %112 : vector<1x1x32xf32> to vector<1x32xf32>
    %c0_53 = arith.constant 0 : index
    %c0_54 = arith.constant 0 : index
    %c0_55 = arith.constant 0 : index
    %114 = vector.load %arg8[%c0_53, %c0_54, %c0_55] : memref<1x1x32xf32, #tpu.memory_space<vmem>>, vector<1x1x32xf32>
    %115 = vector.shape_cast %114 : vector<1x1x32xf32> to vector<1x32xf32>
    %cst_56 = arith.constant dense<0.000000e+00> : vector<16xf32>
    %116 = vector.multi_reduction <add>, %111, %cst_56 [1] : vector<16x32xf32> to vector<16xf32>
    %117 = vector.shape_cast %116 : vector<16xf32> to vector<16x1xf32>
    %cst_57 = arith.constant 3.200000e+01 : f32
    %118 = vector.broadcast %cst_57 : f32 to vector<16x1xf32>
    %119 = arith.divf %117, %118 : vector<16x1xf32>
    %120 = vector.broadcast %119 : vector<16x1xf32> to vector<16x32xf32>
    %121 = arith.subf %111, %120 : vector<16x32xf32>
    %122 = arith.mulf %121, %121 : vector<16x32xf32>
    %cst_58 = arith.constant dense<0.000000e+00> : vector<16xf32>
    %123 = vector.multi_reduction <add>, %122, %cst_58 [1] : vector<16x32xf32> to vector<16xf32>
    %124 = vector.shape_cast %123 : vector<16xf32> to vector<16x1xf32>
    %cst_59 = arith.constant 3.200000e+01 : f32
    %125 = vector.broadcast %cst_59 : f32 to vector<16x1xf32>
    %126 = arith.divf %124, %125 : vector<16x1xf32>
    %127 = vector.broadcast %119 : vector<16x1xf32> to vector<16x32xf32>
    %128 = arith.subf %111, %127 : vector<16x32xf32>
    %cst_60 = arith.constant 9.99999996E-13 : f32
    %129 = vector.broadcast %cst_60 : f32 to vector<16x1xf32>
    %130 = arith.addf %126, %129 : vector<16x1xf32>
    %131 = math.rsqrt %130 : vector<16x1xf32>
    %132 = vector.broadcast %131 : vector<16x1xf32> to vector<16x32xf32>
    %133 = arith.mulf %128, %132 : vector<16x32xf32>
    %134 = vector.broadcast %113 : vector<1x32xf32> to vector<16x32xf32>
    %135 = arith.mulf %133, %134 : vector<16x32xf32>
    %136 = vector.broadcast %115 : vector<1x32xf32> to vector<16x32xf32>
    %137 = arith.addf %135, %136 : vector<16x32xf32>
    %c0_61 = arith.constant 0 : index
    %c0_62 = arith.constant 0 : index
    %c0_63 = arith.constant 0 : index
    %138 = vector.load %arg9[%c0_61, %c0_62, %c0_63] : memref<1x32x64xf32, #tpu.memory_space<vmem>>, vector<1x32x64xf32>
    %139 = vector.shape_cast %138 : vector<1x32x64xf32> to vector<32x64xf32>
    %cst_64 = arith.constant dense<0.000000e+00> : vector<16x64xf32>
    %140 = tpu.matmul %137, %139, %cst_64 {dimension_numbers = #tpu.dot_dimension_numbers<[1], [0], [0], [1], [0, 0, 1, 1], [], []>} : vector<16x32xf32>, vector<32x64xf32>, vector<16x64xf32> -> vector<16x64xf32>
    %c0_65 = arith.constant 0 : index
    %c0_66 = arith.constant 0 : index
    %c0_67 = arith.constant 0 : index
    %141 = vector.load %arg10[%c0_65, %c0_66, %c0_67] : memref<1x1x64xf32, #tpu.memory_space<vmem>>, vector<1x1x64xf32>
    %142 = vector.shape_cast %141 : vector<1x1x64xf32> to vector<1x64xf32>
    %143 = vector.broadcast %142 : vector<1x64xf32> to vector<16x64xf32>
    %144 = arith.addf %140, %143 : vector<16x64xf32>
    %cst_68 = arith.constant 0.000000e+00 : f32
    %145 = vector.broadcast %cst_68 : f32 to vector<16x64xf32>
    %146 = arith.maximumf %144, %145 : vector<16x64xf32>
    %c0_69 = arith.constant 0 : index
    %c0_70 = arith.constant 0 : index
    %c0_71 = arith.constant 0 : index
    %147 = vector.load %arg11[%c0_69, %c0_70, %c0_71] : memref<1x64x32xf32, #tpu.memory_space<vmem>>, vector<1x64x32xf32>
    %148 = vector.shape_cast %147 : vector<1x64x32xf32> to vector<64x32xf32>
    %cst_72 = arith.constant dense<0.000000e+00> : vector<16x32xf32>
    %149 = tpu.matmul %146, %148, %cst_72 {dimension_numbers = #tpu.dot_dimension_numbers<[1], [0], [0], [1], [0, 0, 1, 1], [], []>} : vector<16x64xf32>, vector<64x32xf32>, vector<16x32xf32> -> vector<16x32xf32>
    %c0_73 = arith.constant 0 : index
    %c0_74 = arith.constant 0 : index
    %c0_75 = arith.constant 0 : index
    %150 = vector.load %arg12[%c0_73, %c0_74, %c0_75] : memref<1x1x32xf32, #tpu.memory_space<vmem>>, vector<1x1x32xf32>
    %151 = vector.shape_cast %150 : vector<1x1x32xf32> to vector<1x32xf32>
    %152 = vector.broadcast %151 : vector<1x32xf32> to vector<16x32xf32>
    %153 = arith.addf %149, %152 : vector<16x32xf32>
    %154 = arith.addf %153, %137 : vector<16x32xf32>
    %c0_76 = arith.constant 0 : index
    %c0_77 = arith.constant 0 : index
    %c0_78 = arith.constant 0 : index
    %155 = vector.load %arg13[%c0_76, %c0_77, %c0_78] : memref<1x1x32xf32, #tpu.memory_space<vmem>>, vector<1x1x32xf32>
    %156 = vector.shape_cast %155 : vector<1x1x32xf32> to vector<1x32xf32>
    %c0_79 = arith.constant 0 : index
    %c0_80 = arith.constant 0 : index
    %c0_81 = arith.constant 0 : index
    %157 = vector.load %arg14[%c0_79, %c0_80, %c0_81] : memref<1x1x32xf32, #tpu.memory_space<vmem>>, vector<1x1x32xf32>
    %158 = vector.shape_cast %157 : vector<1x1x32xf32> to vector<1x32xf32>
    %cst_82 = arith.constant dense<0.000000e+00> : vector<16xf32>
    %159 = vector.multi_reduction <add>, %154, %cst_82 [1] : vector<16x32xf32> to vector<16xf32>
    %160 = vector.shape_cast %159 : vector<16xf32> to vector<16x1xf32>
    %cst_83 = arith.constant 3.200000e+01 : f32
    %161 = vector.broadcast %cst_83 : f32 to vector<16x1xf32>
    %162 = arith.divf %160, %161 : vector<16x1xf32>
    %163 = vector.broadcast %162 : vector<16x1xf32> to vector<16x32xf32>
    %164 = arith.subf %154, %163 : vector<16x32xf32>
    %165 = arith.mulf %164, %164 : vector<16x32xf32>
    %cst_84 = arith.constant dense<0.000000e+00> : vector<16xf32>
    %166 = vector.multi_reduction <add>, %165, %cst_84 [1] : vector<16x32xf32> to vector<16xf32>
    %167 = vector.shape_cast %166 : vector<16xf32> to vector<16x1xf32>
    %cst_85 = arith.constant 3.200000e+01 : f32
    %168 = vector.broadcast %cst_85 : f32 to vector<16x1xf32>
    %169 = arith.divf %167, %168 : vector<16x1xf32>
    %170 = vector.broadcast %162 : vector<16x1xf32> to vector<16x32xf32>
    %171 = arith.subf %154, %170 : vector<16x32xf32>
    %cst_86 = arith.constant 9.99999996E-13 : f32
    %172 = vector.broadcast %cst_86 : f32 to vector<16x1xf32>
    %173 = arith.addf %169, %172 : vector<16x1xf32>
    %174 = math.rsqrt %173 : vector<16x1xf32>
    %175 = vector.broadcast %174 : vector<16x1xf32> to vector<16x32xf32>
    %176 = arith.mulf %171, %175 : vector<16x32xf32>
    %177 = vector.broadcast %156 : vector<1x32xf32> to vector<16x32xf32>
    %178 = arith.mulf %176, %177 : vector<16x32xf32>
    %179 = vector.broadcast %158 : vector<1x32xf32> to vector<16x32xf32>
    %180 = arith.addf %178, %179 : vector<16x32xf32>
    %c0_87 = arith.constant 0 : index
    %c0_88 = arith.constant 0 : index
    %181 = vector.load %arg17[%c0_87, %c0_88] : memref<16x32xf32, #tpu.memory_space<vmem>>, vector<16x32xf32>
    tpu.vector_store %arg17[%c0_87, %c0_88], %180 {strides = array<i32>} : memref<16x32xf32, #tpu.memory_space<vmem>>, vector<16x32xf32>,
    %c1_i32 = arith.constant 1 : i32
    %182 = arith.cmpi eq, %arg0, %c1_i32 : i32
    %183 = arith.extui %182 : i1 to i32
    %c0_i32_89 = arith.constant 0 : i32
    %184 = arith.cmpi ne, %183, %c0_i32_89 : i32
    scf.if %184 {
      %185 = vector.extract_strided_slice %180 {offsets = [0, 0], sizes = [1, 32], strides = [1, 1]} : vector<16x32xf32> to vector<1x32xf32>
      %186 = vector.extract_strided_slice %180 {offsets = [8, 0], sizes = [1, 32], strides = [1, 1]} : vector<16x32xf32> to vector<1x32xf32>
      %187 = tpu.concatenate %185, %186 in 0 : vector<1x32xf32>, vector<1x32xf32> -> vector<2x32xf32>
      %c0_90 = arith.constant 0 : index
      %c0_91 = arith.constant 0 : index
      %188 = vector.load %arg15[%c0_90, %c0_91] : memref<32x32xf32, #tpu.memory_space<vmem>>, vector<32x32xf32>
      %cst_92 = arith.constant dense<0.000000e+00> : vector<2x32xf32>
      %189 = tpu.matmul %187, %188, %cst_92 {dimension_numbers = #tpu.dot_dimension_numbers<[1], [0], [0], [1], [0, 0, 1, 1], [], []>} : vector<2x32xf32>, vector<32x32xf32>, vector<2x32xf32> -> vector<2x32xf32>
      %c0_93 = arith.constant 0 : index
      %c0_94 = arith.constant 0 : index
      %190 = vector.load %arg16[%c0_93, %c0_94] : memref<1x32xf32, #tpu.memory_space<vmem>>, vector<1x32xf32>
      %191 = vector.broadcast %190 : vector<1x32xf32> to vector<2x32xf32>
      %192 = arith.addf %189, %191 : vector<2x32xf32>
      %193 = math.tanh %192 : vector<2x32xf32>
      %c0_95 = arith.constant 0 : index
      %c0_96 = arith.constant 0 : index
      %194 = vector.load %arg18[%c0_95, %c0_96] : memref<2x32xf32, #tpu.memory_space<vmem>>, vector<2x32xf32>
      tpu.vector_store %arg18[%c0_95, %c0_96], %193 {strides = array<i32>} : memref<2x32xf32, #tpu.memory_space<vmem>>, vector<2x32xf32>,
    } else {
    }
    return
  }
  func.func @transform_0(%arg0: i32) -> (i32, i32) {
    %c0_i32 = arith.constant 0 : i32
    %c0_i32_0 = arith.constant 0 : i32
    %c0_i32_1 = arith.constant 0 : i32
    return %c0_i32, %c0_i32_0 : i32, i32
  }
  func.func @transform_1(%arg0: i32) -> (i32, i32) {
    %c0_i32 = arith.constant 0 : i32
    %c0_i32_0 = arith.constant 0 : i32
    %c0_i32_1 = arith.constant 0 : i32
    return %c0_i32, %c0_i32_0 : i32, i32
  }
  func.func @transform_2(%arg0: i32) -> (i32, i32, i32) {
    %c0_i32 = arith.constant 0 : i32
    %c0_i32_0 = arith.constant 0 : i32
    %c0_i32_1 = arith.constant 0 : i32
    return %arg0, %c0_i32, %c0_i32_0 : i32, i32, i32
  }
  func.func @transform_3(%arg0: i32) -> (i32, i32, i32) {
    %c0_i32 = arith.constant 0 : i32
    %c0_i32_0 = arith.constant 0 : i32
    %c0_i32_1 = arith.constant 0 : i32
    return %arg0, %c0_i32, %c0_i32_0 : i32, i32, i32
  }
  func.func @transform_4(%arg0: i32) -> (i32, i32, i32) {
    %c0_i32 = arith.constant 0 : i32
    %c0_i32_0 = arith.constant 0 : i32
    %c0_i32_1 = arith.constant 0 : i32
    return %arg0, %c0_i32, %c0_i32_0 : i32, i32, i32
  }
  func.func @transform_5(%arg0: i32) -> (i32, i32, i32) {
    %c0_i32 = arith.constant 0 : i32
    %c0_i32_0 = arith.constant 0 : i32
    %c0_i32_1 = arith.constant 0 : i32
    return %arg0, %c0_i32, %c0_i32_0 : i32, i32, i32
  }
  func.func @transform_6(%arg0: i32) -> (i32, i32, i32) {
    %c0_i32 = arith.constant 0 : i32
    %c0_i32_0 = arith.constant 0 : i32
    %c0_i32_1 = arith.constant 0 : i32
    return %arg0, %c0_i32, %c0_i32_0 : i32, i32, i32
  }
  func.func @transform_7(%arg0: i32) -> (i32, i32, i32) {
    %c0_i32 = arith.constant 0 : i32
    %c0_i32_0 = arith.constant 0 : i32
    %c0_i32_1 = arith.constant 0 : i32
    return %arg0, %c0_i32, %c0_i32_0 : i32, i32, i32
  }
  func.func @transform_8(%arg0: i32) -> (i32, i32, i32) {
    %c0_i32 = arith.constant 0 : i32
    %c0_i32_0 = arith.constant 0 : i32
    %c0_i32_1 = arith.constant 0 : i32
    return %arg0, %c0_i32, %c0_i32_0 : i32, i32, i32
  }
  func.func @transform_9(%arg0: i32) -> (i32, i32, i32) {
    %c0_i32 = arith.constant 0 : i32
    %c0_i32_0 = arith.constant 0 : i32
    %c0_i32_1 = arith.constant 0 : i32
    return %arg0, %c0_i32, %c0_i32_0 : i32, i32, i32
  }
  func.func @transform_10(%arg0: i32) -> (i32, i32, i32) {
    %c0_i32 = arith.constant 0 : i32
    %c0_i32_0 = arith.constant 0 : i32
    %c0_i32_1 = arith.constant 0 : i32
    return %arg0, %c0_i32, %c0_i32_0 : i32, i32, i32
  }
  func.func @transform_11(%arg0: i32) -> (i32, i32, i32) {
    %c0_i32 = arith.constant 0 : i32
    %c0_i32_0 = arith.constant 0 : i32
    %c0_i32_1 = arith.constant 0 : i32
    return %arg0, %c0_i32, %c0_i32_0 : i32, i32, i32
  }
  func.func @transform_12(%arg0: i32) -> (i32, i32, i32) {
    %c0_i32 = arith.constant 0 : i32
    %c0_i32_0 = arith.constant 0 : i32
    %c0_i32_1 = arith.constant 0 : i32
    return %arg0, %c0_i32, %c0_i32_0 : i32, i32, i32
  }
  func.func @transform_13(%arg0: i32) -> (i32, i32, i32) {
    %c0_i32 = arith.constant 0 : i32
    %c0_i32_0 = arith.constant 0 : i32
    %c0_i32_1 = arith.constant 0 : i32
    return %arg0, %c0_i32, %c0_i32_0 : i32, i32, i32
  }
  func.func @transform_14(%arg0: i32) -> (i32, i32) {
    %c0_i32 = arith.constant 0 : i32
    %c0_i32_0 = arith.constant 0 : i32
    %c0_i32_1 = arith.constant 0 : i32
    return %c0_i32, %c0_i32_0 : i32, i32
  }
  func.func @transform_15(%arg0: i32) -> (i32, i32) {
    %c0_i32 = arith.constant 0 : i32
    %c0_i32_0 = arith.constant 0 : i32
    %c0_i32_1 = arith.constant 0 : i32
    return %c0_i32, %c0_i32_0 : i32, i32
  }
  func.func @transform_16(%arg0: i32) -> (i32, i32) {
    %c0_i32 = arith.constant 0 : i32
    %c0_i32_0 = arith.constant 0 : i32
    %c0_i32_1 = arith.constant 0 : i32
    return %c0_i32, %c0_i32_0 : i32, i32
  }
  func.func @transform_17(%arg0: i32) -> (i32, i32) {
    %c0_i32 = arith.constant 0 : i32
    %c0_i32_0 = arith.constant 0 : i32
    %c0_i32_1 = arith.constant 0 : i32
    return %c0_i32, %c0_i32_0 : i32, i32
  }
  func.func @transform_18(%arg0: i32) -> (i32, i32, i32, i32) {
    %c0_i32 = arith.constant 0 : i32
    %c0_i32_0 = arith.constant 0 : i32
    %c0_i32_1 = arith.constant 0 : i32
    %c0_i32_2 = arith.constant 0 : i32
    return %arg0, %c0_i32, %c0_i32_0, %c0_i32_1 : i32, i32, i32, i32
  }
}

</mosaic_0001>

<llo_original>
// kernel: tpu_custom_call.1
$region0: #{tpu_custom_call.1}
  #allocation0 [shape = 'u32[]', space=smem, size = 0x4, offset = 0x4, fixed_abs, tag = 'smem constant byte address 0x4 - core index']
  #allocation1 [shape = 'u32[144,128]{1,0:T(1,128)}', space=vmem, size = 0x12000, scoped, tag = 'internal scratch']
  %s0 = inlined_call_operand.hbm [shape: f32[16,32], index: 0, kind: input, shape index: {}]
  %s1 = inlined_call_operand.hbm [shape: f32[16,16], index: 1, kind: input, shape index: {}]
  %s2 = inlined_call_operand.vmem [shape: f32[2,32,96], index: 2, kind: input, shape index: {}]
  %s3 = inlined_call_operand.vmem [shape: f32[2,1,96], index: 3, kind: input, shape index: {}]
  %s4 = inlined_call_operand.vmem [shape: f32[2,32,32], index: 4, kind: input, shape index: {}]
  %s5 = inlined_call_operand.hbm [shape: f32[2,1,32], index: 5, kind: input, shape index: {}]
  %s6 = inlined_call_operand.hbm [shape: f32[2,1,32], index: 6, kind: input, shape index: {}]
  %s7 = inlined_call_operand.hbm [shape: f32[2,1,32], index: 7, kind: input, shape index: {}]
  %s8 = inlined_call_operand.vmem [shape: f32[2,32,64], index: 8, kind: input, shape index: {}]
  %s9 = inlined_call_operand.hbm [shape: f32[2,1,64], index: 9, kind: input, shape index: {}]
  %s10 = inlined_call_operand.vmem [shape: f32[2,64,32], index: 10, kind: input, shape index: {}]
  %s11 = inlined_call_operand.vmem [shape: f32[2,1,32], index: 11, kind: input, shape index: {}]
  %s12 = inlined_call_operand.vmem [shape: f32[2,1,32], index: 12, kind: input, shape index: {}]
  %s13 = inlined_call_operand.vmem [shape: f32[2,1,32], index: 13, kind: input, shape index: {}]
  %s14 = inlined_call_operand.vmem [shape: f32[32,32], index: 14, kind: input, shape index: {}]
  %s15 = inlined_call_operand.vmem [shape: f32[1,32], index: 15, kind: input, shape index: {}]
  %s16 = inlined_call_operand.hbm [shape: f32[16,32], index: 16, kind: output, shape index: {0}]
  %s17 = inlined_call_operand.hbm [shape: f32[2,32], index: 17, kind: output, shape index: {1}]
  %s18 = inlined_call_operand.hbm [shape: f32[2,4,16,16], index: 18, kind: output, shape index: {2}]
  %19 = xla_tuple %s16, %s17, %s18
  %s20 = sld [smem:[#allocation0]]
  $region145: #{tpu_custom_call.1} parent=0
    _
  %s22 = ssub.s32 1, %s20
  %s23 = scalar_select 0, %s22, %s20
  $region1: #{tpu_custom_call.1} parent=0
    #allocation2 [shape = 'u8[8192]{0}', space=vmem, size = 0x2000, scoped, tag = 'input window, operand 0, single buffered']
    #allocation3 [shape = 's32[2]{0}', space=sflag, size = 0x8, scoped, tag = 'scoped memory for tpu_custom_call.1']
    #allocation4 [shape = 's32[2]{0}', space=sflag, size = 0x8, scoped, tag = 'scoped memory for tpu_custom_call.1']
    #allocation5 [shape = 'u8[8192]{0}', space=vmem, size = 0x2000, scoped, tag = 'input window, operand 1, single buffered']
    #allocation6 [shape = 's32[1]{0}', space=sflag, size = 0x4, scoped, tag = 'scoped memory for tpu_custom_call.1']
    #allocation7 [shape = 'u8[1024]{0}', space=vmem, size = 0x400, scoped, tag = 'input window, operand 5']
    #allocation8 [shape = 'u8[1024]{0}', space=vmem, size = 0x400, scoped, tag = 'input window, operand 6']
    #allocation9 [shape = 'u8[1024]{0}', space=vmem, size = 0x400, scoped, tag = 'input window, operand 7']
    #allocation10 [shape = 'u8[1024]{0}', space=vmem, size = 0x400, scoped, tag = 'input window, operand 9']
    #allocation11 [shape = 'u8[8192]{0}', space=vmem, size = 0x2000, scoped, tag = 'output window, operand 0, single buffered']
    #allocation12 [shape = 'u8[1024]{0}', space=vmem, size = 0x400, scoped, tag = 'output window, operand 1, single buffered']
    #allocation13 [shape = 's32[1]{0}', space=sflag, size = 0x4, scoped, tag = 'scoped memory for tpu_custom_call.1']
    #allocation14 [shape = 'u8[65536]{0}', space=vmem, size = 0x10000, scoped, tag = 'output window, operand 2']
    %24 = vsyncpa [#allocation3], 0
    %25 = vsyncpa [#allocation6], 0
    %26 = vsyncpa [#allocation4], 0
    %27 = vsyncpa [#allocation13], 0
    loop: start=0, step=1, limit=4
    $region2: #{tpu_custom_call.1} parent=1 // loop_pre_header
      _
    $region3: #{tpu_custom_call.1} parent=1 // loop_header
      %s29 = sphi 0, %s33
      %p30 = scmp.ge.s32.totalorder %s29, 4
      %s37 = sphi 0, %s37
      %s39 = sphi 0, %s37
      %s40 = sphi 0, %s39
      %s54 = sphi 0, %s40
      %s58 = sphi 0, %s58
      %s60 = sphi 0, %s58
      %s61 = sphi 0, %s60
      %s75 = sphi 0, %s61
      %s81 = sphi 0, %s83
      %s84 = sphi 0, %s81
      %s85 = sphi 0, %s84
      %s101 = sphi 0, %s85
      %s107 = sphi 0, %s109
      %s110 = sphi 0, %s107
      %s111 = sphi 0, %s110
      %s127 = sphi 0, %s111
      %s133 = sphi 0, %s135
      %s136 = sphi 0, %s133
      %s137 = sphi 0, %s136
      %s153 = sphi 0, %s137
      %s159 = sphi 0, %s161
      %s162 = sphi 0, %s159
      %s163 = sphi 0, %s162
      %s179 = sphi 0, %s163
      %s185 = sphi 0, %s187
      %s188 = sphi 0, %s185
      %s189 = sphi 0, %s188
      %s205 = sphi 0, %s189
      %s211 = sphi 0, %s213
      %s214 = sphi 0, %s211
      %s215 = sphi 0, %s214
      %s231 = sphi 0, %s215
      %s237 = sphi 0, %s239
      %s240 = sphi 0, %s237
      %s241 = sphi 0, %s240
      %s257 = sphi 0, %s241
      %s263 = sphi 0, %s265
      %s266 = sphi 0, %s263
      %s267 = sphi 0, %s266
      %s283 = sphi 0, %s267
      %s289 = sphi 0, %s291
      %s292 = sphi 0, %s289
      %s293 = sphi 0, %s292
      %s309 = sphi 0, %s293
      %s315 = sphi 0, %s317
      %s318 = sphi 0, %s315
      %s319 = sphi 0, %s318
      %s335 = sphi 0, %s319
      %s341 = sphi 0, %s343
      %s344 = sphi 0, %s341
      %s345 = sphi 0, %s344
      %s361 = sphi 0, %s345
      %s367 = sphi 0, %s369
      %s370 = sphi 0, %s367
      %s371 = sphi 0, %s370
      %s387 = sphi 0, %s371
      %s391 = sphi 0, %s391
      %s393 = sphi 0, %s391
      %s394 = sphi 0, %s393
      %s408 = sphi 0, %s394
      %s412 = sphi 0, %s412
      %s414 = sphi 0, %s412
      %s415 = sphi 0, %s414
      %s429 = sphi 0, %s415
      %s433 = sphi 0, %s433
      %s435 = sphi 0, %s433
      %s436 = sphi 0, %s435
      %s450 = sphi 0, %s436
      %s454 = sphi 0, %s454
      %s456 = sphi 0, %s454
      %s457 = sphi 0, %s456
      %s471 = sphi 0, %s457
      %s477 = sphi 0, %s479
      %s480 = sphi 0, %s477
      %s481 = sphi 0, %s480
      %s497 = sphi 0, %s481
    $region4: #{tpu_custom_call.1} parent=1 // loop_header_branch
      %32 = sbr.rel (%p30) target = $region8
    $region5: #{tpu_custom_call.1} parent=1 // loop_body
      %s34 = ssub.s32 %s29, 1
      %s35 = ssub.s32 %s29, 2
      %s36 = sadd.s32 %s29, 1
      %s38 = sadd.s32 %s37, 1
      %p41 = scmp.eq.s32.totalorder %s29, 1
      %p42 = scmp.ne.s32.totalorder %s37, %s39
      %p43 = scmp.eq.s32.totalorder %s29, 0
      %p44 = por %p42, %p43
      %p45 = scmp.ne.s32.totalorder %s37, %s39
      %p46 = scmp.eq.s32.totalorder %s34, 1
      %p47 = por %p45, %p46
      %p48 = scmp.ne.s32.totalorder %s39, %s40
      %p49 = scmp.eq.s32.totalorder %s34, 0
      %p50 = por %p48, %p49
      %p51 = scmp.ne.s32.totalorder %s39, %s40
      %p52 = scmp.eq.s32.totalorder %s35, 1
      %p53 = por %p51, %p52
      %p55 = scmp.ne.s32.totalorder %s40, %s54
      %p56 = scmp.eq.s32.totalorder %s35, 0
      %p57 = por %p55, %p56
      %s59 = sadd.s32 %s58, 1
      %p62 = scmp.eq.s32.totalorder %s29, 1
      %p63 = scmp.ne.s32.totalorder %s58, %s60
      %p64 = scmp.eq.s32.totalorder %s29, 0
      %p65 = por %p63, %p64
      %p66 = scmp.ne.s32.totalorder %s58, %s60
      %p67 = scmp.eq.s32.totalorder %s34, 1
      %p68 = por %p66, %p67
      %p69 = scmp.ne.s32.totalorder %s60, %s61
      %p70 = scmp.eq.s32.totalorder %s34, 0
      %p71 = por %p69, %p70
      %p72 = scmp.ne.s32.totalorder %s60, %s61
      %p73 = scmp.eq.s32.totalorder %s35, 1
      %p74 = por %p72, %p73
      %p76 = scmp.ne.s32.totalorder %s61, %s75
      %p77 = scmp.eq.s32.totalorder %s35, 0
      %p78 = por %p76, %p77
      %s79 = ssub.s32 %s29, %s36
      %p80 = scmp.eq.s32.totalorder %s79, 0
      %s82 = sadd.s32 %s81, 1
      %s83 = scalar_select %p80, %s81, %s82
      %p86 = pneg %p80
      %p87 = scmp.eq.s32.totalorder %s29, 1
      %p88 = por %p86, %p87
      %p89 = scmp.ne.s32.totalorder %s81, %s84
      %p90 = scmp.eq.s32.totalorder %s29, 0
      %p91 = por %p89, %p90
      %p92 = scmp.ne.s32.totalorder %s81, %s84
      %p93 = scmp.eq.s32.totalorder %s34, 1
      %p94 = por %p92, %p93
      %p95 = scmp.ne.s32.totalorder %s84, %s85
      %p96 = scmp.eq.s32.totalorder %s34, 0
      %p97 = por %p95, %p96
      %p98 = scmp.ne.s32.totalorder %s84, %s85
      %p99 = scmp.eq.s32.totalorder %s35, 1
      %p100 = por %p98, %p99
      %p102 = scmp.ne.s32.totalorder %s85, %s101
      %p103 = scmp.eq.s32.totalorder %s35, 0
      %p104 = por %p102, %p103
      %s105 = ssub.s32 %s29, %s36
      %p106 = scmp.eq.s32.totalorder %s105, 0
      %s108 = sadd.s32 %s107, 1
      %s109 = scalar_select %p106, %s107, %s108
      %p112 = pneg %p106
      %p113 = scmp.eq.s32.totalorder %s29, 1
      %p114 = por %p112, %p113
      %p115 = scmp.ne.s32.totalorder %s107, %s110
      %p116 = scmp.eq.s32.totalorder %s29, 0
      %p117 = por %p115, %p116
      %p118 = scmp.ne.s32.totalorder %s107, %s110
      %p119 = scmp.eq.s32.totalorder %s34, 1
      %p120 = por %p118, %p119
      %p121 = scmp.ne.s32.totalorder %s110, %s111
      %p122 = scmp.eq.s32.totalorder %s34, 0
      %p123 = por %p121, %p122
      %p124 = scmp.ne.s32.totalorder %s110, %s111
      %p125 = scmp.eq.s32.totalorder %s35, 1
      %p126 = por %p124, %p125
      %p128 = scmp.ne.s32.totalorder %s111, %s127
      %p129 = scmp.eq.s32.totalorder %s35, 0
      %p130 = por %p128, %p129
      %s131 = ssub.s32 %s29, %s36
      %p132 = scmp.eq.s32.totalorder %s131, 0
      %s134 = sadd.s32 %s133, 1
      %s135 = scalar_select %p132, %s133, %s134
      %p138 = pneg %p132
      %p139 = scmp.eq.s32.totalorder %s29, 1
      %p140 = por %p138, %p139
      %p141 = scmp.ne.s32.totalorder %s133, %s136
      %p142 = scmp.eq.s32.totalorder %s29, 0
      %p143 = por %p141, %p142
      %p144 = scmp.ne.s32.totalorder %s133, %s136
      %p145 = scmp.eq.s32.totalorder %s34, 1
      %p146 = por %p144, %p145
      %p147 = scmp.ne.s32.totalorder %s136, %s137
      %p148 = scmp.eq.s32.totalorder %s34, 0
      %p149 = por %p147, %p148
      %p150 = scmp.ne.s32.totalorder %s136, %s137
      %p151 = scmp.eq.s32.totalorder %s35, 1
      %p152 = por %p150, %p151
      %p154 = scmp.ne.s32.totalorder %s137, %s153
      %p155 = scmp.eq.s32.totalorder %s35, 0
      %p156 = por %p154, %p155
      %s157 = ssub.s32 %s29, %s36
      %p158 = scmp.eq.s32.totalorder %s157, 0
      %s160 = sadd.s32 %s159, 1
      %s161 = scalar_select %p158, %s159, %s160
      %p164 = pneg %p158
      %p165 = scmp.eq.s32.totalorder %s29, 1
      %p166 = por %p164, %p165
      %p167 = scmp.ne.s32.totalorder %s159, %s162
      %p168 = scmp.eq.s32.totalorder %s29, 0
      %p169 = por %p167, %p168
      %p170 = scmp.ne.s32.totalorder %s159, %s162
      %p171 = scmp.eq.s32.totalorder %s34, 1
      %p172 = por %p170, %p171
      %p173 = scmp.ne.s32.totalorder %s162, %s163
      %p174 = scmp.eq.s32.totalorder %s34, 0
      %p175 = por %p173, %p174
      %p176 = scmp.ne.s32.totalorder %s162, %s163
      %p177 = scmp.eq.s32.totalorder %s35, 1
      %p178 = por %p176, %p177
      %p180 = scmp.ne.s32.totalorder %s163, %s179
      %p181 = scmp.eq.s32.totalorder %s35, 0
      %p182 = por %p180, %p181
      %s183 = ssub.s32 %s29, %s36
      %p184 = scmp.eq.s32.totalorder %s183, 0
      %s186 = sadd.s32 %s185, 1
      %s187 = scalar_select %p184, %s185, %s186
      %p190 = pneg %p184
      %p191 = scmp.eq.s32.totalorder %s29, 1
      %p192 = por %p190, %p191
      %p193 = scmp.ne.s32.totalorder %s185, %s188
      %p194 = scmp.eq.s32.totalorder %s29, 0
      %p195 = por %p193, %p194
      %p196 = scmp.ne.s32.totalorder %s185, %s188
      %p197 = scmp.eq.s32.totalorder %s34, 1
      %p198 = por %p196, %p197
      %p199 = scmp.ne.s32.totalorder %s188, %s189
      %p200 = scmp.eq.s32.totalorder %s34, 0
      %p201 = por %p199, %p200
      %p202 = scmp.ne.s32.totalorder %s188, %s189
      %p203 = scmp.eq.s32.totalorder %s35, 1
      %p204 = por %p202, %p203
      %p206 = scmp.ne.s32.totalorder %s189, %s205
      %p207 = scmp.eq.s32.totalorder %s35, 0
      %p208 = por %p206, %p207
      %s209 = ssub.s32 %s29, %s36
      %p210 = scmp.eq.s32.totalorder %s209, 0
      %s212 = sadd.s32 %s211, 1
      %s213 = scalar_select %p210, %s211, %s212
      %p216 = pneg %p210
      %p217 = scmp.eq.s32.totalorder %s29, 1
      %p218 = por %p216, %p217
      %p219 = scmp.ne.s32.totalorder %s211, %s214
      %p220 = scmp.eq.s32.totalorder %s29, 0
      %p221 = por %p219, %p220
      %p222 = scmp.ne.s32.totalorder %s211, %s214
      %p223 = scmp.eq.s32.totalorder %s34, 1
      %p224 = por %p222, %p223
      %p225 = scmp.ne.s32.totalorder %s214, %s215
      %p226 = scmp.eq.s32.totalorder %s34, 0
      %p227 = por %p225, %p226
      %p228 = scmp.ne.s32.totalorder %s214, %s215
      %p229 = scmp.eq.s32.totalorder %s35, 1
      %p230 = por %p228, %p229
      %p232 = scmp.ne.s32.totalorder %s215, %s231
      %p233 = scmp.eq.s32.totalorder %s35, 0
      %p234 = por %p232, %p233
      %s235 = ssub.s32 %s29, %s36
      %p236 = scmp.eq.s32.totalorder %s235, 0
      %s238 = sadd.s32 %s237, 1
      %s239 = scalar_select %p236, %s237, %s238
      %p242 = pneg %p236
      %p243 = scmp.eq.s32.totalorder %s29, 1
      %p244 = por %p242, %p243
      %p245 = scmp.ne.s32.totalorder %s237, %s240
      %p246 = scmp.eq.s32.totalorder %s29, 0
      %p247 = por %p245, %p246
      %p248 = scmp.ne.s32.totalorder %s237, %s240
      %p249 = scmp.eq.s32.totalorder %s34, 1
      %p250 = por %p248, %p249
      %p251 = scmp.ne.s32.totalorder %s240, %s241
      %p252 = scmp.eq.s32.totalorder %s34, 0
      %p253 = por %p251, %p252
      %p254 = scmp.ne.s32.totalorder %s240, %s241
      %p255 = scmp.eq.s32.totalorder %s35, 1
      %p256 = por %p254, %p255
      %p258 = scmp.ne.s32.totalorder %s241, %s257
      %p259 = scmp.eq.s32.totalorder %s35, 0
      %p260 = por %p258, %p259
      %s261 = ssub.s32 %s29, %s36
      %p262 = scmp.eq.s32.totalorder %s261, 0
      %s264 = sadd.s32 %s263, 1
      %s265 = scalar_select %p262, %s263, %s264
      %p268 = pneg %p262
      %p269 = scmp.eq.s32.totalorder %s29, 1
      %p270 = por %p268, %p269
      %p271 = scmp.ne.s32.totalorder %s263, %s266
      %p272 = scmp.eq.s32.totalorder %s29, 0
      %p273 = por %p271, %p272
      %p274 = scmp.ne.s32.totalorder %s263, %s266
      %p275 = scmp.eq.s32.totalorder %s34, 1
      %p276 = por %p274, %p275
      %p277 = scmp.ne.s32.totalorder %s266, %s267
      %p278 = scmp.eq.s32.totalorder %s34, 0
      %p279 = por %p277, %p278
      %p280 = scmp.ne.s32.totalorder %s266, %s267
      %p281 = scmp.eq.s32.totalorder %s35, 1
      %p282 = por %p280, %p281
      %p284 = scmp.ne.s32.totalorder %s267, %s283
      %p285 = scmp.eq.s32.totalorder %s35, 0
      %p286 = por %p284, %p285
      %s287 = ssub.s32 %s29, %s36
      %p288 = scmp.eq.s32.totalorder %s287, 0
      %s290 = sadd.s32 %s289, 1
      %s291 = scalar_select %p288, %s289, %s290
      %p294 = pneg %p288
      %p295 = scmp.eq.s32.totalorder %s29, 1
      %p296 = por %p294, %p295
      %p297 = scmp.ne.s32.totalorder %s289, %s292
      %p298 = scmp.eq.s32.totalorder %s29, 0
      %p299 = por %p297, %p298
      %p300 = scmp.ne.s32.totalorder %s289, %s292
      %p301 = scmp.eq.s32.totalorder %s34, 1
      %p302 = por %p300, %p301
      %p303 = scmp.ne.s32.totalorder %s292, %s293
      %p304 = scmp.eq.s32.totalorder %s34, 0
      %p305 = por %p303, %p304
      %p306 = scmp.ne.s32.totalorder %s292, %s293
      %p307 = scmp.eq.s32.totalorder %s35, 1
      %p308 = por %p306, %p307
      %p310 = scmp.ne.s32.totalorder %s293, %s309
      %p311 = scmp.eq.s32.totalorder %s35, 0
      %p312 = por %p310, %p311
      %s313 = ssub.s32 %s29, %s36
      %p314 = scmp.eq.s32.totalorder %s313, 0
      %s316 = sadd.s32 %s315, 1
      %s317 = scalar_select %p314, %s315, %s316
      %p320 = pneg %p314
      %p321 = scmp.eq.s32.totalorder %s29, 1
      %p322 = por %p320, %p321
      %p323 = scmp.ne.s32.totalorder %s315, %s318
      %p324 = scmp.eq.s32.totalorder %s29, 0
      %p325 = por %p323, %p324
      %p326 = scmp.ne.s32.totalorder %s315, %s318
      %p327 = scmp.eq.s32.totalorder %s34, 1
      %p328 = por %p326, %p327
      %p329 = scmp.ne.s32.totalorder %s318, %s319
      %p330 = scmp.eq.s32.totalorder %s34, 0
      %p331 = por %p329, %p330
      %p332 = scmp.ne.s32.totalorder %s318, %s319
      %p333 = scmp.eq.s32.totalorder %s35, 1
      %p334 = por %p332, %p333
      %p336 = scmp.ne.s32.totalorder %s319, %s335
      %p337 = scmp.eq.s32.totalorder %s35, 0
      %p338 = por %p336, %p337
      %s339 = ssub.s32 %s29, %s36
      %p340 = scmp.eq.s32.totalorder %s339, 0
      %s342 = sadd.s32 %s341, 1
      %s343 = scalar_select %p340, %s341, %s342
      %p346 = pneg %p340
      %p347 = scmp.eq.s32.totalorder %s29, 1
      %p348 = por %p346, %p347
      %p349 = scmp.ne.s32.totalorder %s341, %s344
      %p350 = scmp.eq.s32.totalorder %s29, 0
      %p351 = por %p349, %p350
      %p352 = scmp.ne.s32.totalorder %s341, %s344
      %p353 = scmp.eq.s32.totalorder %s34, 1
      %p354 = por %p352, %p353
      %p355 = scmp.ne.s32.totalorder %s344, %s345
      %p356 = scmp.eq.s32.totalorder %s34, 0
      %p357 = por %p355, %p356
      %p358 = scmp.ne.s32.totalorder %s344, %s345
      %p359 = scmp.eq.s32.totalorder %s35, 1
      %p360 = por %p358, %p359
      %p362 = scmp.ne.s32.totalorder %s345, %s361
      %p363 = scmp.eq.s32.totalorder %s35, 0
      %p364 = por %p362, %p363
      %s365 = ssub.s32 %s29, %s36
      %p366 = scmp.eq.s32.totalorder %s365, 0
      %s368 = sadd.s32 %s367, 1
      %s369 = scalar_select %p366, %s367, %s368
      %p372 = pneg %p366
      %p373 = scmp.eq.s32.totalorder %s29, 1
      %p374 = por %p372, %p373
      %p375 = scmp.ne.s32.totalorder %s367, %s370
      %p376 = scmp.eq.s32.totalorder %s29, 0
      %p377 = por %p375, %p376
      %p378 = scmp.ne.s32.totalorder %s367, %s370
      %p379 = scmp.eq.s32.totalorder %s34, 1
      %p380 = por %p378, %p379
      %p381 = scmp.ne.s32.totalorder %s370, %s371
      %p382 = scmp.eq.s32.totalorder %s34, 0
      %p383 = por %p381, %p382
      %p384 = scmp.ne.s32.totalorder %s370, %s371
      %p385 = scmp.eq.s32.totalorder %s35, 1
      %p386 = por %p384, %p385
      %p388 = scmp.ne.s32.totalorder %s371, %s387
      %p389 = scmp.eq.s32.totalorder %s35, 0
      %p390 = por %p388, %p389
      %s392 = sadd.s32 %s391, 1
      %p395 = scmp.eq.s32.totalorder %s29, 1
      %p396 = scmp.ne.s32.totalorder %s391, %s393
      %p397 = scmp.eq.s32.totalorder %s29, 0
      %p398 = por %p396, %p397
      %p399 = scmp.ne.s32.totalorder %s391, %s393
      %p400 = scmp.eq.s32.totalorder %s34, 1
      %p401 = por %p399, %p400
      %p402 = scmp.ne.s32.totalorder %s393, %s394
      %p403 = scmp.eq.s32.totalorder %s34, 0
      %p404 = por %p402, %p403
      %p405 = scmp.ne.s32.totalorder %s393, %s394
      %p406 = scmp.eq.s32.totalorder %s35, 1
      %p407 = por %p405, %p406
      %p409 = scmp.ne.s32.totalorder %s394, %s408
      %p410 = scmp.eq.s32.totalorder %s35, 0
      %p411 = por %p409, %p410
      %s413 = sadd.s32 %s412, 1
      %p416 = scmp.eq.s32.totalorder %s29, 1
      %p417 = scmp.ne.s32.totalorder %s412, %s414
      %p418 = scmp.eq.s32.totalorder %s29, 0
      %p419 = por %p417, %p418
      %p420 = scmp.ne.s32.totalorder %s412, %s414
      %p421 = scmp.eq.s32.totalorder %s34, 1
      %p422 = por %p420, %p421
      %p423 = scmp.ne.s32.totalorder %s414, %s415
      %p424 = scmp.eq.s32.totalorder %s34, 0
      %p425 = por %p423, %p424
      %p426 = scmp.ne.s32.totalorder %s414, %s415
      %p427 = scmp.eq.s32.totalorder %s35, 1
      %p428 = por %p426, %p427
      %p430 = scmp.ne.s32.totalorder %s415, %s429
      %p431 = scmp.eq.s32.totalorder %s35, 0
      %p432 = por %p430, %p431
      %s434 = sadd.s32 %s433, 1
      %p437 = scmp.eq.s32.totalorder %s29, 1
      %p438 = scmp.ne.s32.totalorder %s433, %s435
      %p439 = scmp.eq.s32.totalorder %s29, 0
      %p440 = por %p438, %p439
      %p441 = scmp.ne.s32.totalorder %s433, %s435
      %p442 = scmp.eq.s32.totalorder %s34, 1
      %p443 = por %p441, %p442
      %p444 = scmp.ne.s32.totalorder %s435, %s436
      %p445 = scmp.eq.s32.totalorder %s34, 0
      %p446 = por %p444, %p445
      %p447 = scmp.ne.s32.totalorder %s435, %s436
      %p448 = scmp.eq.s32.totalorder %s35, 1
      %p449 = por %p447, %p448
      %p451 = scmp.ne.s32.totalorder %s436, %s450
      %p452 = scmp.eq.s32.totalorder %s35, 0
      %p453 = por %p451, %p452
      %s455 = sadd.s32 %s454, 1
      %p458 = scmp.eq.s32.totalorder %s29, 1
      %p459 = scmp.ne.s32.totalorder %s454, %s456
      %p460 = scmp.eq.s32.totalorder %s29, 0
      %p461 = por %p459, %p460
      %p462 = scmp.ne.s32.totalorder %s454, %s456
      %p463 = scmp.eq.s32.totalorder %s34, 1
      %p464 = por %p462, %p463
      %p465 = scmp.ne.s32.totalorder %s456, %s457
      %p466 = scmp.eq.s32.totalorder %s34, 0
      %p467 = por %p465, %p466
      %p468 = scmp.ne.s32.totalorder %s456, %s457
      %p469 = scmp.eq.s32.totalorder %s35, 1
      %p470 = por %p468, %p469
      %p472 = scmp.ne.s32.totalorder %s457, %s471
      %p473 = scmp.eq.s32.totalorder %s35, 0
      %p474 = por %p472, %p473
      %s475 = ssub.s32 %s29, %s36
      %p476 = scmp.eq.s32.totalorder %s475, 0
      %s478 = sadd.s32 %s477, 1
      %s479 = scalar_select %p476, %s477, %s478
      %p482 = pneg %p476
      %p483 = scmp.eq.s32.totalorder %s29, 1
      %p484 = por %p482, %p483
      %p485 = scmp.ne.s32.totalorder %s477, %s480
      %p486 = scmp.eq.s32.totalorder %s29, 0
      %p487 = por %p485, %p486
      %p488 = scmp.ne.s32.totalorder %s477, %s480
      %p489 = scmp.eq.s32.totalorder %s34, 1
      %p490 = por %p488, %p489
      %p491 = scmp.ne.s32.totalorder %s480, %s481
      %p492 = scmp.eq.s32.totalorder %s34, 0
      %p493 = por %p491, %p492
      %p494 = scmp.ne.s32.totalorder %s480, %s481
      %p495 = scmp.eq.s32.totalorder %s35, 1
      %p496 = por %p494, %p495
      %p498 = scmp.ne.s32.totalorder %s481, %s497
      %p499 = scmp.eq.s32.totalorder %s35, 0
      %p500 = por %p498, %p499
      %p501 = scmp.le.s32.totalorder 1, %s29
      %p502 = scmp.lt.s32.totalorder %s29, 3
      %p503 = pnand %p501, %p502
      %p504 = pneg %p503
      // Predicated region
      $region9: #{tpu_custom_call.1} parent=5 // pred_check
        _
      $region10: #{tpu_custom_call.1} parent=5 // pred_check_branch
        %506 = sbr.rel (%p503) target = $region12
      $region11: #{tpu_custom_call.1} parent=5 // pred_region
        %s507 = ssub.s32 %s29, 1
        // Predicated region
        $region13: #{tpu_custom_call.1} parent=11 // pred_check
          %p508 = pneg %p50
        $region14: #{tpu_custom_call.1} parent=11 // pred_check_branch
          %510 = sbr.rel (%p508) target = $region16
        $region15: #{tpu_custom_call.1} parent=11 // pred_region
          %s512 = ssub.s32 256, 256
          %513 = vsyncadd [#allocation3], %s512
          %s514 = sshll.u32 [#allocation2], 4
          %s515 = int_to_ptr.vmem [resolvable:$true] %s514
          %520 = dma.hbm_to_vmem [thread:$0]  %s0, 256, %s515, [#allocation3], 128, 128, 8
        $region16: #{tpu_custom_call.1} parent=11 // pred_fallthru
          _
        // Predicated region
        $region17: #{tpu_custom_call.1} parent=11 // pred_check
          %p521 = pneg %p71
        $region18: #{tpu_custom_call.1} parent=11 // pred_check_branch
          %523 = sbr.rel (%p521) target = $region20
        $region19: #{tpu_custom_call.1} parent=11 // pred_region
          %s525 = ssub.s32 256, 256
          %526 = vsyncadd [#allocation6], %s525
          %s527 = sshll.u32 [#allocation5], 4
          %s528 = int_to_ptr.vmem [resolvable:$true] %s527
          %533 = dma.hbm_to_vmem [thread:$0]  %s1, 256, %s528, [#allocation6], 128, 128, 8
        $region20: #{tpu_custom_call.1} parent=11 // pred_fallthru
          _
        // Predicated region
        $region21: #{tpu_custom_call.1} parent=11 // pred_check
          %p534 = pneg %p404
        $region22: #{tpu_custom_call.1} parent=11 // pred_check_branch
          %536 = sbr.rel (%p534) target = $region24
        $region23: #{tpu_custom_call.1} parent=11 // pred_region
          _
        $region24: #{tpu_custom_call.1} parent=11 // pred_fallthru
          _
        // Predicated region
        $region25: #{tpu_custom_call.1} parent=11 // pred_check
          %p537 = pneg %p425
        $region26: #{tpu_custom_call.1} parent=11 // pred_check_branch
          %539 = sbr.rel (%p537) target = $region28
        $region27: #{tpu_custom_call.1} parent=11 // pred_region
          _
        $region28: #{tpu_custom_call.1} parent=11 // pred_fallthru
          _
      $region12: #{tpu_custom_call.1} parent=5 // pred_fallthru
        _
      %p540 = scmp.lt.s32.totalorder %s29, 2
      // Predicated region
      $region29: #{tpu_custom_call.1} parent=5 // pred_check
        %p541 = pneg %p540
      $region30: #{tpu_custom_call.1} parent=5 // pred_check_branch
        %543 = sbr.rel (%p541) target = $region32
      $region31: #{tpu_custom_call.1} parent=5 // pred_region
        // Predicated region
        $region33: #{tpu_custom_call.1} parent=31 // pred_check
          %p544 = pneg %p91
        $region34: #{tpu_custom_call.1} parent=31 // pred_check_branch
          %546 = sbr.rel (%p544) target = $region36
        $region35: #{tpu_custom_call.1} parent=31 // pred_region
          %p547 = scmp.lt.s32.totalorder %s29, 1
          %s548 = scalar_select %p547, %s29, 1
          %s549 = smul.addr %s548, 4
          %s550 = smul.addr %s549, 8
          %s551 = scalar_lea.vmem %s2, %s550
        $region36: #{tpu_custom_call.1} parent=31 // pred_fallthru
          _
        // Predicated region
        $region37: #{tpu_custom_call.1} parent=31 // pred_check
          %p552 = pneg %p117
        $region38: #{tpu_custom_call.1} parent=31 // pred_check_branch
          %554 = sbr.rel (%p552) target = $region40
        $region39: #{tpu_custom_call.1} parent=31 // pred_region
          %p555 = scmp.lt.s32.totalorder %s29, 1
          %s556 = scalar_select %p555, %s29, 1
          %s557 = scalar_lea.vmem %s3, %s556
        $region40: #{tpu_custom_call.1} parent=31 // pred_fallthru
          _
        // Predicated region
        $region41: #{tpu_custom_call.1} parent=31 // pred_check
          %p558 = pneg %p143
        $region42: #{tpu_custom_call.1} parent=31 // pred_check_branch
          %560 = sbr.rel (%p558) target = $region44
        $region43: #{tpu_custom_call.1} parent=31 // pred_region
          %p561 = scmp.lt.s32.totalorder %s29, 1
          %s562 = scalar_select %p561, %s29, 1
          %s563 = smul.addr %s562, 4
          %s564 = smul.addr %s563, 8
          %s565 = scalar_lea.vmem %s4, %s564
        $region44: #{tpu_custom_call.1} parent=31 // pred_fallthru
          _
        // Predicated region
        $region45: #{tpu_custom_call.1} parent=31 // pred_check
          %p566 = pneg %p169
        $region46: #{tpu_custom_call.1} parent=31 // pred_check_branch
          %568 = sbr.rel (%p566) target = $region48
        $region47: #{tpu_custom_call.1} parent=31 // pred_region
          %s569 = sand.u32 %s29, 1
          %s570 = scalar_lea.sflag [#allocation3], %s569
          %s571 = sand.u32 %s159, 1
          %s572 = scalar_lea.vmem [#allocation7], %s571
          %s574 = ssub.s32 16, 16
          %575 = vsyncadd %s570, %s574
          %s576 = smul.addr %s29, 16
          %s577 = scalar_lea.hbm %s5, %s576
          %s579 = sshll.u32 %s572, 4
          %s580 = int_to_ptr.vmem [resolvable:$true] %s579
          %582 = dma.hbm_to_vmem [thread:$0]  %s577, 16, %s580, %s570
        $region48: #{tpu_custom_call.1} parent=31 // pred_fallthru
          _
        // Predicated region
        $region49: #{tpu_custom_call.1} parent=31 // pred_check
          %p583 = pneg %p195
        $region50: #{tpu_custom_call.1} parent=31 // pred_check_branch
          %585 = sbr.rel (%p583) target = $region52
        $region51: #{tpu_custom_call.1} parent=31 // pred_region
          %s586 = sand.u32 %s29, 1
          %s587 = scalar_lea.sflag [#allocation3], %s586
          %s588 = sand.u32 %s185, 1
          %s589 = scalar_lea.vmem [#allocation8], %s588
          %s591 = ssub.s32 16, 16
          %592 = vsyncadd %s587, %s591
          %s593 = smul.addr %s29, 16
          %s594 = scalar_lea.hbm %s6, %s593
          %s596 = sshll.u32 %s589, 4
          %s597 = int_to_ptr.vmem [resolvable:$true] %s596
          %599 = dma.hbm_to_vmem [thread:$0]  %s594, 16, %s597, %s587
        $region52: #{tpu_custom_call.1} parent=31 // pred_fallthru
          _
        // Predicated region
        $region53: #{tpu_custom_call.1} parent=31 // pred_check
          %p600 = pneg %p221
        $region54: #{tpu_custom_call.1} parent=31 // pred_check_branch
          %602 = sbr.rel (%p600) target = $region56
        $region55: #{tpu_custom_call.1} parent=31 // pred_region
          %s603 = sand.u32 %s29, 1
          %s604 = scalar_lea.sflag [#allocation3], %s603
          %s605 = sand.u32 %s211, 1
          %s606 = scalar_lea.vmem [#allocation9], %s605
          %s608 = ssub.s32 16, 16
          %609 = vsyncadd %s604, %s608
          %s610 = smul.addr %s29, 16
          %s611 = scalar_lea.hbm %s7, %s610
          %s613 = sshll.u32 %s606, 4
          %s614 = int_to_ptr.vmem [resolvable:$true] %s613
          %616 = dma.hbm_to_vmem [thread:$0]  %s611, 16, %s614, %s604
        $region56: #{tpu_custom_call.1} parent=31 // pred_fallthru
          _
        // Predicated region
        $region57: #{tpu_custom_call.1} parent=31 // pred_check
          %p617 = pneg %p247
        $region58: #{tpu_custom_call.1} parent=31 // pred_check_branch
          %619 = sbr.rel (%p617) target = $region60
        $region59: #{tpu_custom_call.1} parent=31 // pred_region
          %p620 = scmp.lt.s32.totalorder %s29, 1
          %s621 = scalar_select %p620, %s29, 1
          %s622 = smul.addr %s621, 4
          %s623 = smul.addr %s622, 8
          %s624 = scalar_lea.vmem %s8, %s623
        $region60: #{tpu_custom_call.1} parent=31 // pred_fallthru
          _
        // Predicated region
        $region61: #{tpu_custom_call.1} parent=31 // pred_check
          %p625 = pneg %p273
        $region62: #{tpu_custom_call.1} parent=31 // pred_check_branch
          %627 = sbr.rel (%p625) target = $region64
        $region63: #{tpu_custom_call.1} parent=31 // pred_region
          %s628 = sand.u32 %s29, 1
          %s629 = scalar_lea.sflag [#allocation3], %s628
          %s630 = sand.u32 %s263, 1
          %s631 = scalar_lea.vmem [#allocation10], %s630
          %s633 = ssub.s32 16, 16
          %634 = vsyncadd %s629, %s633
          %s635 = smul.addr %s29, 16
          %s636 = scalar_lea.hbm %s9, %s635
          %s638 = sshll.u32 %s631, 4
          %s639 = int_to_ptr.vmem [resolvable:$true] %s638
          %641 = dma.hbm_to_vmem [thread:$0]  %s636, 16, %s639, %s629
        $region64: #{tpu_custom_call.1} parent=31 // pred_fallthru
          _
        // Predicated region
        $region65: #{tpu_custom_call.1} parent=31 // pred_check
          %p642 = pneg %p299
        $region66: #{tpu_custom_call.1} parent=31 // pred_check_branch
          %644 = sbr.rel (%p642) target = $region68
        $region67: #{tpu_custom_call.1} parent=31 // pred_region
          %p645 = scmp.lt.s32.totalorder %s29, 1
          %s646 = scalar_select %p645, %s29, 1
          %s647 = smul.addr %s646, 8
          %s648 = smul.addr %s647, 8
          %s649 = scalar_lea.vmem %s10, %s648
        $region68: #{tpu_custom_call.1} parent=31 // pred_fallthru
          _
        // Predicated region
        $region69: #{tpu_custom_call.1} parent=31 // pred_check
          %p650 = pneg %p325
        $region70: #{tpu_custom_call.1} parent=31 // pred_check_branch
          %652 = sbr.rel (%p650) target = $region72
        $region71: #{tpu_custom_call.1} parent=31 // pred_region
          %p653 = scmp.lt.s32.totalorder %s29, 1
          %s654 = scalar_select %p653, %s29, 1
          %s655 = scalar_lea.vmem %s11, %s654
        $region72: #{tpu_custom_call.1} parent=31 // pred_fallthru
          _
        // Predicated region
        $region73: #{tpu_custom_call.1} parent=31 // pred_check
          %p656 = pneg %p351
        $region74: #{tpu_custom_call.1} parent=31 // pred_check_branch
          %658 = sbr.rel (%p656) target = $region76
        $region75: #{tpu_custom_call.1} parent=31 // pred_region
          %p659 = scmp.lt.s32.totalorder %s29, 1
          %s660 = scalar_select %p659, %s29, 1
          %s661 = scalar_lea.vmem %s12, %s660
        $region76: #{tpu_custom_call.1} parent=31 // pred_fallthru
          _
        // Predicated region
        $region77: #{tpu_custom_call.1} parent=31 // pred_check
          %p662 = pneg %p377
        $region78: #{tpu_custom_call.1} parent=31 // pred_check_branch
          %664 = sbr.rel (%p662) target = $region80
        $region79: #{tpu_custom_call.1} parent=31 // pred_region
          %p665 = scmp.lt.s32.totalorder %s29, 1
          %s666 = scalar_select %p665, %s29, 1
          %s667 = scalar_lea.vmem %s13, %s666
        $region80: #{tpu_custom_call.1} parent=31 // pred_fallthru
          _
      $region32: #{tpu_custom_call.1} parent=5 // pred_fallthru
        _
      %p668 = scmp.le.s32.totalorder 1, %s29
      %p669 = scmp.lt.s32.totalorder %s29, 3
      %p670 = pnand %p668, %p669
      %p671 = pneg %p670
      // Predicated region
      $region81: #{tpu_custom_call.1} parent=5 // pred_check
        _
      $region82: #{tpu_custom_call.1} parent=5 // pred_check_branch
        %673 = sbr.rel (%p670) target = $region84
      $region83: #{tpu_custom_call.1} parent=5 // pred_region
        %s674 = ssub.s32 %s29, 1
        // Predicated region
        $region85: #{tpu_custom_call.1} parent=83 // pred_check
          %p675 = pneg %p50
        $region86: #{tpu_custom_call.1} parent=83 // pred_check_branch
          %677 = sbr.rel (%p675) target = $region88
        $region87: #{tpu_custom_call.1} parent=83 // pred_region
          %678 = dma.done [#allocation3], 256
        $region88: #{tpu_custom_call.1} parent=83 // pred_fallthru
          _
        // Predicated region
        $region89: #{tpu_custom_call.1} parent=83 // pred_check
          %p679 = pneg %p71
        $region90: #{tpu_custom_call.1} parent=83 // pred_check_branch
          %681 = sbr.rel (%p679) target = $region92
        $region91: #{tpu_custom_call.1} parent=83 // pred_region
          %682 = dma.done [#allocation6], 256
        $region92: #{tpu_custom_call.1} parent=83 // pred_fallthru
          _
        %s683 = sand.u32 %s34, 1
        %s684 = scalar_lea.sflag [#allocation3], %s683
        %s685 = sand.u32 %s162, 1
        %s686 = scalar_lea.vmem [#allocation7], %s685
        // Predicated region
        $region93: #{tpu_custom_call.1} parent=83 // pred_check
          %p687 = pneg %p175
        $region94: #{tpu_custom_call.1} parent=83 // pred_check_branch
          %689 = sbr.rel (%p687) target = $region96
        $region95: #{tpu_custom_call.1} parent=83 // pred_region
          %690 = dma.done %s684, 16
        $region96: #{tpu_custom_call.1} parent=83 // pred_fallthru
          _
        %s691 = sand.u32 %s34, 1
        %s692 = scalar_lea.sflag [#allocation3], %s691
        %s693 = sand.u32 %s188, 1
        %s694 = scalar_lea.vmem [#allocation8], %s693
        // Predicated region
        $region97: #{tpu_custom_call.1} parent=83 // pred_check
          %p695 = pneg %p201
        $region98: #{tpu_custom_call.1} parent=83 // pred_check_branch
          %697 = sbr.rel (%p695) target = $region100
        $region99: #{tpu_custom_call.1} parent=83 // pred_region
          %698 = dma.done %s692, 16
        $region100: #{tpu_custom_call.1} parent=83 // pred_fallthru
          _
        %s699 = sand.u32 %s34, 1
        %s700 = scalar_lea.sflag [#allocation3], %s699
        %s701 = sand.u32 %s214, 1
        %s702 = scalar_lea.vmem [#allocation9], %s701
        // Predicated region
        $region101: #{tpu_custom_call.1} parent=83 // pred_check
          %p703 = pneg %p227
        $region102: #{tpu_custom_call.1} parent=83 // pred_check_branch
          %705 = sbr.rel (%p703) target = $region104
        $region103: #{tpu_custom_call.1} parent=83 // pred_region
          %706 = dma.done %s700, 16
        $region104: #{tpu_custom_call.1} parent=83 // pred_fallthru
          _
        %s707 = sand.u32 %s34, 1
        %s708 = scalar_lea.sflag [#allocation3], %s707
        %s709 = sand.u32 %s266, 1
        %s710 = scalar_lea.vmem [#allocation10], %s709
        // Predicated region
        $region105: #{tpu_custom_call.1} parent=83 // pred_check
          %p711 = pneg %p279
        $region106: #{tpu_custom_call.1} parent=83 // pred_check_branch
          %713 = sbr.rel (%p711) target = $region108
        $region107: #{tpu_custom_call.1} parent=83 // pred_region
          %714 = dma.done %s708, 16
        $region108: #{tpu_custom_call.1} parent=83 // pred_fallthru
          _
        %p715 = pneg %p50
        %p716 = pneg %p47
        %p717 = pneg %p71
        %p718 = pneg %p68
        %p719 = scmp.lt.s32.totalorder %s34, 1
        %s720 = scalar_select %p719, %s34, 1
        %s721 = smul.addr %s720, 4
        %s722 = smul.addr %s721, 8
        %s723 = scalar_lea.vmem %s2, %s722
        %p724 = pneg %p97
        %p725 = pneg %p94
        %p726 = scmp.lt.s32.totalorder %s34, 1
        %s727 = scalar_select %p726, %s34, 1
        %s728 = scalar_lea.vmem %s3, %s727
        %p729 = pneg %p123
        %p730 = pneg %p120
        %p731 = scmp.lt.s32.totalorder %s34, 1
        %s732 = scalar_select %p731, %s34, 1
        %s733 = smul.addr %s732, 4
        %s734 = smul.addr %s733, 8
        %s735 = scalar_lea.vmem %s4, %s734
        %p736 = pneg %p149
        %p737 = pneg %p146
        %s738 = sand.u32 %s34, 1
        %s739 = scalar_lea.sflag [#allocation3], %s738
        %s740 = sand.u32 %s162, 1
        %s741 = scalar_lea.vmem [#allocation7], %s740
        %p742 = pneg %p175
        %p743 = pneg %p172
        %s744 = sand.u32 %s34, 1
        %s745 = scalar_lea.sflag [#allocation3], %s744
        %s746 = sand.u32 %s188, 1
        %s747 = scalar_lea.vmem [#allocation8], %s746
        %p748 = pneg %p201
        %p749 = pneg %p198
        %s750 = sand.u32 %s34, 1
        %s751 = scalar_lea.sflag [#allocation3], %s750
        %s752 = sand.u32 %s214, 1
        %s753 = scalar_lea.vmem [#allocation9], %s752
        %p754 = pneg %p227
        %p755 = pneg %p224
        %p756 = scmp.lt.s32.totalorder %s34, 1
        %s757 = scalar_select %p756, %s34, 1
        %s758 = smul.addr %s757, 4
        %s759 = smul.addr %s758, 8
        %s760 = scalar_lea.vmem %s8, %s759
        %p761 = pneg %p253
        %p762 = pneg %p250
        %s763 = sand.u32 %s34, 1
        %s764 = scalar_lea.sflag [#allocation3], %s763
        %s765 = sand.u32 %s266, 1
        %s766 = scalar_lea.vmem [#allocation10], %s765
        %p767 = pneg %p279
        %p768 = pneg %p276
        %p769 = scmp.lt.s32.totalorder %s34, 1
        %s770 = scalar_select %p769, %s34, 1
        %s771 = smul.addr %s770, 8
        %s772 = smul.addr %s771, 8
        %s773 = scalar_lea.vmem %s10, %s772
        %p774 = pneg %p305
        %p775 = pneg %p302
        %p776 = scmp.lt.s32.totalorder %s34, 1
        %s777 = scalar_select %p776, %s34, 1
        %s778 = scalar_lea.vmem %s11, %s777
        %p779 = pneg %p331
        %p780 = pneg %p328
        %p781 = scmp.lt.s32.totalorder %s34, 1
        %s782 = scalar_select %p781, %s34, 1
        %s783 = scalar_lea.vmem %s12, %s782
        %p784 = pneg %p357
        %p785 = pneg %p354
        %p786 = scmp.lt.s32.totalorder %s34, 1
        %s787 = scalar_select %p786, %s34, 1
        %s788 = scalar_lea.vmem %s13, %s787
        %p789 = pneg %p383
        %p790 = pneg %p380
        %p791 = pneg %p404
        %p792 = pneg %p401
        %p793 = pneg %p425
        %p794 = pneg %p422
        %p795 = pneg %p446
        %p796 = pneg %p443
        %p797 = pneg %p467
        %p798 = pneg %p464
        %p799 = pneg %p493
        %p800 = pneg %p490
        %s801 = sand.u32 %s34, 1
        %s802 = scalar_lea.sflag [#allocation4], %s801
        %s803 = sand.u32 %s480, 1
        %s804 = smul.addr %s803, 64
        %s805 = scalar_lea.vmem [#allocation14], %s804
        %p806 = scmp.lt.s32.totalorder %s34, 1
        %s807 = scalar_select %p806, %s34, 1
        %s808 = smul.addr %s807, 4
        %s809 = smul.addr %s808, 8
        %s810 = scalar_lea.vmem %s2, %s809
        %p811 = scmp.lt.s32.totalorder %s34, 1
        %s812 = scalar_select %p811, %s34, 1
        %s813 = scalar_lea.vmem %s3, %s812
        %p814 = scmp.lt.s32.totalorder %s34, 1
        %s815 = scalar_select %p814, %s34, 1
        %s816 = smul.addr %s815, 4
        %s817 = smul.addr %s816, 8
        %s818 = scalar_lea.vmem %s4, %s817
        %p819 = scmp.lt.s32.totalorder %s34, 1
        %s820 = scalar_select %p819, %s34, 1
        %s821 = smul.addr %s820, 4
        %s822 = smul.addr %s821, 8
        %s823 = scalar_lea.vmem %s8, %s822
        %p824 = scmp.lt.s32.totalorder %s34, 1
        %s825 = scalar_select %p824, %s34, 1
        %s826 = smul.addr %s825, 8
        %s827 = smul.addr %s826, 8
        %s828 = scalar_lea.vmem %s10, %s827
        %p829 = scmp.lt.s32.totalorder %s34, 1
        %s830 = scalar_select %p829, %s34, 1
        %s831 = scalar_lea.vmem %s11, %s830
        %p832 = scmp.lt.s32.totalorder %s34, 1
        %s833 = scalar_select %p832, %s34, 1
        %s834 = scalar_lea.vmem %s12, %s833
        %p835 = scmp.lt.s32.totalorder %s34, 1
        %s836 = scalar_select %p835, %s34, 1
        %s837 = scalar_lea.vmem %s13, %s836
        %p838 = scmp.eq.s32.totalorder %s34, 0
        // Predicated region
        $region109: #{tpu_custom_call.1} parent=83 // pred_check
          %p839 = pneg %p838
        $region110: #{tpu_custom_call.1} parent=83 // pred_check_branch
          %841 = sbr.rel (%p839) target = $region112
        $region111: #{tpu_custom_call.1} parent=83 // pred_region
          %v842 = vld [vmem:[#allocation2] sm:$0xff]
          %v843 = vld [vmem:[#allocation2 + $0x8] sm:$0xff]
          %vm844 = vcmask 261120
          %845 = vst.msk [vmem:[#allocation11] sm:$0xff] %vm844, %v842
          %846 = vst.msk [vmem:[#allocation11 + $0x8] sm:$0xff] %vm844, %v843
        $region112: #{tpu_custom_call.1} parent=83 // pred_fallthru
          _
        %v847 = vld [vmem:[#allocation11] sm:$0xff]
        %v848 = vld [vmem:[#allocation11 + $0x8] sm:$0xff]
        %v849 = vld [vmem:[%s810] sm:$0xff]
        %v850 = vld [vmem:[%s810 + $0x8] sm:$0xff]
        %v851 = vld [vmem:[%s810 + $0x10] sm:$0xff]
        %v852 = vld [vmem:[%s810 + $0x18] sm:$0xff]
        %v853 = vld [vmem:[%s813] sm:$0x1]
        %v855 = vlaneseq
        %v856 = vshrl.u32 %v855, 7
        %v857 = vsub.s32 0, %v856
        %v858 = vrot.slane %v853, %v857
        %vm860 = vcmask 261120
        %v862 = vsel %vm860, %v847, 0
        %v865 = vsel %vm860, %v848, 0
        %867 = vmatprep.subr.mxu0 0.0
        %868 = vmatpush1.msra.mxu0 %v849
        %869 = vmatprep.subr.mxu0 0.0
        %870 = vmatpush1.msra.mxu0 %v850
        %871 = vmatprep.subr.mxu0 0.0
        %872 = vmatpush1.msra.mxu0 %v851
        %873 = vmatprep.subr.mxu0 0.0
        %874 = vmatpush1.msra.mxu0 %v852
        %875 = vmatprep.subr.mxu0 0.0
        %876 = vmatpush1.msra.mxu0 0.0
        %877 = vmatprep.subr.mxu0 0.0
        %878 = vmatpush1.msra.mxu0 0.0
        %879 = vmatprep.subr.mxu0 0.0
        %880 = vmatpush1.msra.mxu0 0.0
        %881 = vmatprep.subr.mxu0 0.0
        %882 = vmatpush1.msra.mxu0 0.0
        %883 = vmatprep.subr.mxu0 0.0
        %884 = vmatpush1.msra.mxu0 0.0
        %885 = vmatprep.subr.mxu0 0.0
        %886 = vmatpush1.msra.mxu0 0.0
        %887 = vmatprep.subr.mxu0 0.0
        %888 = vmatpush1.msra.mxu0 0.0
        %889 = vmatprep.subr.mxu0 0.0
        %890 = vmatpush1.msra.mxu0 0.0
        %891 = vmatprep.subr.mxu0 0.0
        %892 = vmatpush1.msra.mxu0 0.0
        %893 = vmatprep.subr.mxu0 0.0
        %894 = vmatpush1.msra.mxu0 0.0
        %895 = vmatprep.subr.mxu0 0.0
        %896 = vmatpush1.msra.mxu0 0.0
        %897 = vmatprep.subr.mxu0 0.0
        %898 = vmatpush1.msra.mxu0 0.0
        %899 = vmatprep.subr.mxu0 0.0
        %900 = vmatpush1.msra.mxu0 0.0
        %901 = vmatprep.subr.mxu0 0.0
        %902 = vmatpush1.msra.mxu0 0.0
        %903 = vmatprep.subr.mxu0 0.0
        %904 = vmatpush1.msra.mxu0 0.0
        %905 = vmatprep.subr.mxu0 0.0
        %906 = vmatpush1.msra.mxu0 0.0
        %907 = vmatprep.subr.mxu0 0.0
        %908 = vmatpush1.msra.mxu0 0.0
        %909 = vmatprep.subr.mxu0 0.0
        %910 = vmatpush1.msra.mxu0 0.0
        %911 = vmatprep.subr.mxu0 0.0
        %912 = vmatpush1.msra.mxu0 0.0
        %913 = vmatprep.subr.mxu0 0.0
        %914 = vmatpush1.msra.mxu0 0.0
        %915 = vmatprep.subr.mxu0 0.0
        %916 = vmatpush1.msra.mxu0 0.0
        %917 = vmatprep.subr.mxu0 0.0
        %918 = vmatpush1.msra.mxu0 0.0
        %919 = vmatprep.subr.mxu0 0.0
        %920 = vmatpush1.msra.mxu0 0.0
        %921 = vmatprep.subr.mxu0 0.0
        %922 = vmatpush1.msra.mxu0 0.0
        %923 = vmatprep.subr.mxu0 0.0
        %924 = vmatpush1.msra.mxu0 0.0
        %925 = vmatprep.subr.mxu0 0.0
        %926 = vmatpush1.msra.mxu0 0.0
        %927 = vmatprep.subr.mxu0 0.0
        %928 = vmatpush1.msra.mxu0 0.0
        %929 = vmatprep.subr.mxu0 0.0
        %930 = vmatpush1.msra.mxu0 0.0
        %931 = vmatprep.mubr.f32.mxu0 0.0
        %932 = vmatmul.mubr.f32.gmra.mrb[0].mxu0 %v862
        %v933 = vpop.f32.mrb[0].mxu0
        %v934 = vadd.f32 %v858, %v933
        %v935 = vpop.f32.mrb[0].mxu0
        %936 = vmatprep.mubr.f32.mxu0 0.0
        %937 = vmatmul.mubr.f32.gmra.mrb[0].mxu0 %v865
        %v938 = vpop.f32.mrb[0].mxu0
        %v939 = vadd.f32 %v858, %v938
        %v940 = vpop.f32.mrb[0].mxu0
        %941 = vdwg.mxu0
        %v942 = vld [vmem:[#allocation5] sm:$0xff]
        %v943 = vld [vmem:[#allocation5 + $0x8] sm:$0xff]
        %946 = vrot.lane.b32.xlu0 %v934, 96
        %v947 = vpop.permute.xlu0 %946
        %948 = vrot.lane.b32.xlu0 %v939, 96
        %v949 = vpop.permute.xlu0 %948
        %vm950 = vcmask 64512
        %v951 = vsel %vm950, %v934, 0
        %v953 = vsel %vm950, %v939, 0
        %v955 = vsel %vm950, %v947, 0
        %v957 = vsel %vm950, %v949, 0
        %959 = vmatprep.subr.mxu0 0.0
        %960 = vmatpush1.xpose.msra.mxu0 %v955
        %961 = vmatprep.subr.mxu0 0.0
        %962 = vmatpush1.xpose.msra.mxu0 %v957
        %963 = vmatprep.subr.mxu0 0.0
        %964 = vmatpush1.xpose.msra.mxu0 0.0
        %965 = vmatprep.subr.mxu0 0.0
        %966 = vmatpush1.xpose.msra.mxu0 0.0
        %967 = vmatprep.subr.mxu0 0.0
        %968 = vmatpush1.xpose.msra.mxu0 0.0
        %969 = vmatprep.subr.mxu0 0.0
        %970 = vmatpush1.xpose.msra.mxu0 0.0
        %971 = vmatprep.subr.mxu0 0.0
        %972 = vmatpush1.xpose.msra.mxu0 0.0
        %973 = vmatprep.subr.mxu0 0.0
        %974 = vmatpush1.xpose.msra.mxu0 0.0
        %975 = vmatprep.subr.mxu0 0.0
        %976 = vmatpush1.xpose.msra.mxu0 0.0
        %977 = vmatprep.subr.mxu0 0.0
        %978 = vmatpush1.xpose.msra.mxu0 0.0
        %979 = vmatprep.subr.mxu0 0.0
        %980 = vmatpush1.xpose.msra.mxu0 0.0
        %981 = vmatprep.subr.mxu0 0.0
        %982 = vmatpush1.xpose.msra.mxu0 0.0
        %983 = vmatprep.subr.mxu0 0.0
        %984 = vmatpush1.xpose.msra.mxu0 0.0
        %985 = vmatprep.subr.mxu0 0.0
        %986 = vmatpush1.xpose.msra.mxu0 0.0
        %987 = vmatprep.subr.mxu0 0.0
        %988 = vmatpush1.xpose.msra.mxu0 0.0
        %989 = vmatprep.subr.mxu0 0.0
        %990 = vmatpush1.xpose.msra.mxu0 0.0
        %991 = vmatprep.subr.mxu0 0.0
        %992 = vmatpush1.xpose.msra.mxu0 0.0
        %993 = vmatprep.subr.mxu0 0.0
        %994 = vmatpush1.xpose.msra.mxu0 0.0
        %995 = vmatprep.subr.mxu0 0.0
        %996 = vmatpush1.xpose.msra.mxu0 0.0
        %997 = vmatprep.subr.mxu0 0.0
        %998 = vmatpush1.xpose.msra.mxu0 0.0
        %999 = vmatprep.subr.mxu0 0.0
        %1000 = vmatpush1.xpose.msra.mxu0 0.0
        %1001 = vmatprep.subr.mxu0 0.0
        %1002 = vmatpush1.xpose.msra.mxu0 0.0
        %1003 = vmatprep.subr.mxu0 0.0
        %1004 = vmatpush1.xpose.msra.mxu0 0.0
        %1005 = vmatprep.subr.mxu0 0.0
        %1006 = vmatpush1.xpose.msra.mxu0 0.0
        %1007 = vmatprep.subr.mxu0 0.0
        %1008 = vmatpush1.xpose.msra.mxu0 0.0
        %1009 = vmatprep.subr.mxu0 0.0
        %1010 = vmatpush1.xpose.msra.mxu0 0.0
        %1011 = vmatprep.subr.mxu0 0.0
        %1012 = vmatpush1.xpose.msra.mxu0 0.0
        %1013 = vmatprep.subr.mxu0 0.0
        %1014 = vmatpush1.xpose.msra.mxu0 0.0
        %1015 = vmatprep.subr.mxu0 0.0
        %1016 = vmatpush1.xpose.msra.mxu0 0.0
        %1017 = vmatprep.subr.mxu0 0.0
        %1018 = vmatpush1.xpose.msra.mxu0 0.0
        %1019 = vmatprep.subr.mxu0 0.0
        %1020 = vmatpush1.xpose.msra.mxu0 0.0
        %1021 = vmatprep.subr.mxu0 0.0
        %1022 = vmatpush1.xpose.msra.mxu0 0.0
        %1023 = vmatprep.mubr.f32.mxu0 0.0
        %1024 = vmatmul.mubr.f32.gmra.mrb[0].mxu0 %v951
        %v1025 = vpop.f32.mrb[0].mxu0
        %v1026 = vadd.f32 0.0, %v1025
        %v1027 = vpop.f32.mrb[0].mxu0
        %1028 = vmatprep.mubr.f32.mxu0 0.0
        %1029 = vmatmul.mubr.f32.gmra.mrb[0].mxu0 %v953
        %v1030 = vpop.f32.mrb[0].mxu0
        %v1031 = vadd.f32 0.0, %v1030
        %v1032 = vpop.f32.mrb[0].mxu0
        %1033 = vdwg.mxu0
        %v1034 = vmul.f32 %v1026, 0.35355338
        %v1035 = vmul.f32 %v1031, 0.35355338
        %v1036 = vadd.f32 %v1034, %v942
        %v1037 = vadd.f32 %v1035, %v943
        %vm1038 = vcmask 130048
        %v1039 = vsel %vm1038, %v1036, -inf
        %1040 = vmax.xlane.f32.xlu0 %v1039
        %v1041 = vpop.xlane.xlu0 %1040
        %v1042 = vsel %vm1038, %v1037, -inf
        %1043 = vmax.xlane.f32.xlu0 %v1042
        %v1044 = vpop.xlane.xlu0 %1043
        %v1045 = vsub.f32 %v1036, %v1041
        %v1046 = vsub.f32 %v1037, %v1044
        %v1047 = vmul.f32 %v1045, 1.442695
        %v1048 = vpow.pop %v1047
        %v1049 = vmul.f32 %v1046, 1.442695
        %v1050 = vpow.pop %v1049
        %v1051 = vsel %vm1038, %v1048, 0.0
        %1052 = vadd.xlane.f32.xlu0 %v1051
        %v1053 = vpop.xlane.xlu0 %1052
        %v1054 = vsel %vm1038, %v1050, 0.0
        %1055 = vadd.xlane.f32.xlu0 %v1054
        %v1056 = vpop.xlane.xlu0 %1055
        %v1057 = vrcp.pop %v1053
        %v1058 = vrcp.pop %v1056
        %v1059 = vmul.f32 %v1048, %v1057
        %v1060 = vmul.f32 %v1050, %v1058
        %1061 = vst.msk [vmem:[%s805] sm:$0xff] %vm1038, %v1059
        %1062 = vst.msk [vmem:[%s805 + $0x8] sm:$0xff] %vm1038, %v1060
        %1063 = vrot.lane.b32.xlu0 %v934, 64
        %v1064 = vpop.permute.xlu0 %1063
        %1065 = vrot.lane.b32.xlu0 %v939, 64
        %v1066 = vpop.permute.xlu0 %1065
        %v1070 = vsel %vm1038, %v1059, 0
        %v1073 = vsel %vm1038, %v1060, 0
        %1075 = vmatprep.subr.mxu0 0.0
        %1076 = vmatpush1.msra.mxu0 %v1064
        %1077 = vmatprep.subr.mxu0 0.0
        %1078 = vmatpush1.msra.mxu0 %v1066
        %1079 = vmatprep.subr.mxu0 0.0
        %1080 = vmatpush1.msra.mxu0 0.0
        %1081 = vmatprep.subr.mxu0 0.0
        %1082 = vmatpush1.msra.mxu0 0.0
        %1083 = vmatprep.subr.mxu0 0.0
        %1084 = vmatpush1.msra.mxu0 0.0
        %1085 = vmatprep.subr.mxu0 0.0
        %1086 = vmatpush1.msra.mxu0 0.0
        %1087 = vmatprep.subr.mxu0 0.0
        %1088 = vmatpush1.msra.mxu0 0.0
        %1089 = vmatprep.subr.mxu0 0.0
        %1090 = vmatpush1.msra.mxu0 0.0
        %1091 = vmatprep.subr.mxu0 0.0
        %1092 = vmatpush1.msra.mxu0 0.0
        %1093 = vmatprep.subr.mxu0 0.0
        %1094 = vmatpush1.msra.mxu0 0.0
        %1095 = vmatprep.subr.mxu0 0.0
        %1096 = vmatpush1.msra.mxu0 0.0
        %1097 = vmatprep.subr.mxu0 0.0
        %1098 = vmatpush1.msra.mxu0 0.0
        %1099 = vmatprep.subr.mxu0 0.0
        %1100 = vmatpush1.msra.mxu0 0.0
        %1101 = vmatprep.subr.mxu0 0.0
        %1102 = vmatpush1.msra.mxu0 0.0
        %1103 = vmatprep.subr.mxu0 0.0
        %1104 = vmatpush1.msra.mxu0 0.0
        %1105 = vmatprep.subr.mxu0 0.0
        %1106 = vmatpush1.msra.mxu0 0.0
        %1107 = vmatprep.subr.mxu0 0.0
        %1108 = vmatpush1.msra.mxu0 0.0
        %1109 = vmatprep.subr.mxu0 0.0
        %1110 = vmatpush1.msra.mxu0 0.0
        %1111 = vmatprep.subr.mxu0 0.0
        %1112 = vmatpush1.msra.mxu0 0.0
        %1113 = vmatprep.subr.mxu0 0.0
        %1114 = vmatpush1.msra.mxu0 0.0
        %1115 = vmatprep.subr.mxu0 0.0
        %1116 = vmatpush1.msra.mxu0 0.0
        %1117 = vmatprep.subr.mxu0 0.0
        %1118 = vmatpush1.msra.mxu0 0.0
        %1119 = vmatprep.subr.mxu0 0.0
        %1120 = vmatpush1.msra.mxu0 0.0
        %1121 = vmatprep.subr.mxu0 0.0
        %1122 = vmatpush1.msra.mxu0 0.0
        %1123 = vmatprep.subr.mxu0 0.0
        %1124 = vmatpush1.msra.mxu0 0.0
        %1125 = vmatprep.subr.mxu0 0.0
        %1126 = vmatpush1.msra.mxu0 0.0
        %1127 = vmatprep.subr.mxu0 0.0
        %1128 = vmatpush1.msra.mxu0 0.0
        %1129 = vmatprep.subr.mxu0 0.0
        %1130 = vmatpush1.msra.mxu0 0.0
        %1131 = vmatprep.subr.mxu0 0.0
        %1132 = vmatpush1.msra.mxu0 0.0
        %1133 = vmatprep.subr.mxu0 0.0
        %1134 = vmatpush1.msra.mxu0 0.0
        %1135 = vmatprep.subr.mxu0 0.0
        %1136 = vmatpush1.msra.mxu0 0.0
        %1137 = vmatprep.subr.mxu0 0.0
        %1138 = vmatpush1.msra.mxu0 0.0
        %1139 = vmatprep.mubr.f32.mxu0 0.0
        %1140 = vmatmul.mubr.f32.gmra.mrb[0].mxu0 %v1070
        %v1141 = vpop.f32.mrb[0].mxu0
        %v1142 = vadd.f32 0.0, %v1141
        %v1143 = vpop.f32.mrb[0].mxu0
        %1144 = vmatprep.mubr.f32.mxu0 0.0
        %1145 = vmatmul.mubr.f32.gmra.mrb[0].mxu0 %v1073
        %v1146 = vpop.f32.mrb[0].mxu0
        %v1147 = vadd.f32 0.0, %v1146
        %v1148 = vpop.f32.mrb[0].mxu0
        %1149 = vdwg.mxu0
        %1150 = vrot.lane.b32.xlu0 %v934, 120
        %v1151 = vpop.permute.xlu0 %1150
        %1152 = vrot.lane.b32.xlu0 %v939, 120
        %v1153 = vpop.permute.xlu0 %1152
        %1154 = vrot.lane.b32.xlu0 %v934, 88
        %v1155 = vpop.permute.xlu0 %1154
        %1156 = vrot.lane.b32.xlu0 %v939, 88
        %v1157 = vpop.permute.xlu0 %1156
        %v1158 = vsel %vm950, %v1151, 0
        %v1160 = vsel %vm950, %v1153, 0
        %v1162 = vsel %vm950, %v1155, 0
        %v1164 = vsel %vm950, %v1157, 0
        %1166 = vmatprep.subr.mxu0 0.0
        %1167 = vmatpush1.xpose.msra.mxu0 %v1162
        %1168 = vmatprep.subr.mxu0 0.0
        %1169 = vmatpush1.xpose.msra.mxu0 %v1164
        %1170 = vmatprep.subr.mxu0 0.0
        %1171 = vmatpush1.xpose.msra.mxu0 0.0
        %1172 = vmatprep.subr.mxu0 0.0
        %1173 = vmatpush1.xpose.msra.mxu0 0.0
        %1174 = vmatprep.subr.mxu0 0.0
        %1175 = vmatpush1.xpose.msra.mxu0 0.0
        %1176 = vmatprep.subr.mxu0 0.0
        %1177 = vmatpush1.xpose.msra.mxu0 0.0
        %1178 = vmatprep.subr.mxu0 0.0
        %1179 = vmatpush1.xpose.msra.mxu0 0.0
        %1180 = vmatprep.subr.mxu0 0.0
        %1181 = vmatpush1.xpose.msra.mxu0 0.0
        %1182 = vmatprep.subr.mxu0 0.0
        %1183 = vmatpush1.xpose.msra.mxu0 0.0
        %1184 = vmatprep.subr.mxu0 0.0
        %1185 = vmatpush1.xpose.msra.mxu0 0.0
        %1186 = vmatprep.subr.mxu0 0.0
        %1187 = vmatpush1.xpose.msra.mxu0 0.0
        %1188 = vmatprep.subr.mxu0 0.0
        %1189 = vmatpush1.xpose.msra.mxu0 0.0
        %1190 = vmatprep.subr.mxu0 0.0
        %1191 = vmatpush1.xpose.msra.mxu0 0.0
        %1192 = vmatprep.subr.mxu0 0.0
        %1193 = vmatpush1.xpose.msra.mxu0 0.0
        %1194 = vmatprep.subr.mxu0 0.0
        %1195 = vmatpush1.xpose.msra.mxu0 0.0
        %1196 = vmatprep.subr.mxu0 0.0
        %1197 = vmatpush1.xpose.msra.mxu0 0.0
        %1198 = vmatprep.subr.mxu0 0.0
        %1199 = vmatpush1.xpose.msra.mxu0 0.0
        %1200 = vmatprep.subr.mxu0 0.0
        %1201 = vmatpush1.xpose.msra.mxu0 0.0
        %1202 = vmatprep.subr.mxu0 0.0
        %1203 = vmatpush1.xpose.msra.mxu0 0.0
        %1204 = vmatprep.subr.mxu0 0.0
        %1205 = vmatpush1.xpose.msra.mxu0 0.0
        %1206 = vmatprep.subr.mxu0 0.0
        %1207 = vmatpush1.xpose.msra.mxu0 0.0
        %1208 = vmatprep.subr.mxu0 0.0
        %1209 = vmatpush1.xpose.msra.mxu0 0.0
        %1210 = vmatprep.subr.mxu0 0.0
        %1211 = vmatpush1.xpose.msra.mxu0 0.0
        %1212 = vmatprep.subr.mxu0 0.0
        %1213 = vmatpush1.xpose.msra.mxu0 0.0
        %1214 = vmatprep.subr.mxu0 0.0
        %1215 = vmatpush1.xpose.msra.mxu0 0.0
        %1216 = vmatprep.subr.mxu0 0.0
        %1217 = vmatpush1.xpose.msra.mxu0 0.0
        %1218 = vmatprep.subr.mxu0 0.0
        %1219 = vmatpush1.xpose.msra.mxu0 0.0
        %1220 = vmatprep.subr.mxu0 0.0
        %1221 = vmatpush1.xpose.msra.mxu0 0.0
        %1222 = vmatprep.subr.mxu0 0.0
        %1223 = vmatpush1.xpose.msra.mxu0 0.0
        %1224 = vmatprep.subr.mxu0 0.0
        %1225 = vmatpush1.xpose.msra.mxu0 0.0
        %1226 = vmatprep.subr.mxu0 0.0
        %1227 = vmatpush1.xpose.msra.mxu0 0.0
        %1228 = vmatprep.subr.mxu0 0.0
        %1229 = vmatpush1.xpose.msra.mxu0 0.0
        %1230 = vmatprep.mubr.f32.mxu0 0.0
        %1231 = vmatmul.mubr.f32.gmra.mrb[0].mxu0 %v1158
        %v1232 = vpop.f32.mrb[0].mxu0
        %v1233 = vadd.f32 0.0, %v1232
        %v1234 = vpop.f32.mrb[0].mxu0
        %1235 = vmatprep.mubr.f32.mxu0 0.0
        %1236 = vmatmul.mubr.f32.gmra.mrb[0].mxu0 %v1160
        %v1237 = vpop.f32.mrb[0].mxu0
        %v1238 = vadd.f32 0.0, %v1237
        %v1239 = vpop.f32.mrb[0].mxu0
        %1240 = vdwg.mxu0
        %v1241 = vmul.f32 %v1233, 0.35355338
        %v1242 = vmul.f32 %v1238, 0.35355338
        %v1243 = vadd.f32 %v1241, %v942
        %v1244 = vadd.f32 %v1242, %v943
        %v1245 = vsel %vm1038, %v1243, -inf
        %1246 = vmax.xlane.f32.xlu0 %v1245
        %v1247 = vpop.xlane.xlu0 %1246
        %v1248 = vsel %vm1038, %v1244, -inf
        %1249 = vmax.xlane.f32.xlu0 %v1248
        %v1250 = vpop.xlane.xlu0 %1249
        %v1251 = vsub.f32 %v1243, %v1247
        %v1252 = vsub.f32 %v1244, %v1250
        %v1253 = vmul.f32 %v1251, 1.442695
        %v1254 = vpow.pop %v1253
        %v1255 = vmul.f32 %v1252, 1.442695
        %v1256 = vpow.pop %v1255
        %v1257 = vsel %vm1038, %v1254, 0.0
        %1258 = vadd.xlane.f32.xlu0 %v1257
        %v1259 = vpop.xlane.xlu0 %1258
        %v1260 = vsel %vm1038, %v1256, 0.0
        %1261 = vadd.xlane.f32.xlu0 %v1260
        %v1262 = vpop.xlane.xlu0 %1261
        %v1263 = vrcp.pop %v1259
        %v1264 = vrcp.pop %v1262
        %v1265 = vmul.f32 %v1254, %v1263
        %v1266 = vmul.f32 %v1256, %v1264
        %s1267 = scalar_lea.vmem %s805, 16 [#allocation14]
        %1268 = vst.msk [vmem:[%s1267] sm:$0xff] %vm1038, %v1265
        %1269 = vst.msk [vmem:[%s1267 + $0x8] sm:$0xff] %vm1038, %v1266
        %1270 = vrot.lane.b32.xlu0 %v934, 56
        %v1271 = vpop.permute.xlu0 %1270
        %1272 = vrot.lane.b32.xlu0 %v939, 56
        %v1273 = vpop.permute.xlu0 %1272
        %v1277 = vsel %vm1038, %v1265, 0
        %v1280 = vsel %vm1038, %v1266, 0
        %1282 = vmatprep.subr.mxu0 0.0
        %1283 = vmatpush1.msra.mxu0 %v1271
        %1284 = vmatprep.subr.mxu0 0.0
        %1285 = vmatpush1.msra.mxu0 %v1273
        %1286 = vmatprep.subr.mxu0 0.0
        %1287 = vmatpush1.msra.mxu0 0.0
        %1288 = vmatprep.subr.mxu0 0.0
        %1289 = vmatpush1.msra.mxu0 0.0
        %1290 = vmatprep.subr.mxu0 0.0
        %1291 = vmatpush1.msra.mxu0 0.0
        %1292 = vmatprep.subr.mxu0 0.0
        %1293 = vmatpush1.msra.mxu0 0.0
        %1294 = vmatprep.subr.mxu0 0.0
        %1295 = vmatpush1.msra.mxu0 0.0
        %1296 = vmatprep.subr.mxu0 0.0
        %1297 = vmatpush1.msra.mxu0 0.0
        %1298 = vmatprep.subr.mxu0 0.0
        %1299 = vmatpush1.msra.mxu0 0.0
        %1300 = vmatprep.subr.mxu0 0.0
        %1301 = vmatpush1.msra.mxu0 0.0
        %1302 = vmatprep.subr.mxu0 0.0
        %1303 = vmatpush1.msra.mxu0 0.0
        %1304 = vmatprep.subr.mxu0 0.0
        %1305 = vmatpush1.msra.mxu0 0.0
        %1306 = vmatprep.subr.mxu0 0.0
        %1307 = vmatpush1.msra.mxu0 0.0
        %1308 = vmatprep.subr.mxu0 0.0
        %1309 = vmatpush1.msra.mxu0 0.0
        %1310 = vmatprep.subr.mxu0 0.0
        %1311 = vmatpush1.msra.mxu0 0.0
        %1312 = vmatprep.subr.mxu0 0.0
        %1313 = vmatpush1.msra.mxu0 0.0
        %1314 = vmatprep.subr.mxu0 0.0
        %1315 = vmatpush1.msra.mxu0 0.0
        %1316 = vmatprep.subr.mxu0 0.0
        %1317 = vmatpush1.msra.mxu0 0.0
        %1318 = vmatprep.subr.mxu0 0.0
        %1319 = vmatpush1.msra.mxu0 0.0
        %1320 = vmatprep.subr.mxu0 0.0
        %1321 = vmatpush1.msra.mxu0 0.0
        %1322 = vmatprep.subr.mxu0 0.0
        %1323 = vmatpush1.msra.mxu0 0.0
        %1324 = vmatprep.subr.mxu0 0.0
        %1325 = vmatpush1.msra.mxu0 0.0
        %1326 = vmatprep.subr.mxu0 0.0
        %1327 = vmatpush1.msra.mxu0 0.0
        %1328 = vmatprep.subr.mxu0 0.0
        %1329 = vmatpush1.msra.mxu0 0.0
        %1330 = vmatprep.subr.mxu0 0.0
        %1331 = vmatpush1.msra.mxu0 0.0
        %1332 = vmatprep.subr.mxu0 0.0
        %1333 = vmatpush1.msra.mxu0 0.0
        %1334 = vmatprep.subr.mxu0 0.0
        %1335 = vmatpush1.msra.mxu0 0.0
        %1336 = vmatprep.subr.mxu0 0.0
        %1337 = vmatpush1.msra.mxu0 0.0
        %1338 = vmatprep.subr.mxu0 0.0
        %1339 = vmatpush1.msra.mxu0 0.0
        %1340 = vmatprep.subr.mxu0 0.0
        %1341 = vmatpush1.msra.mxu0 0.0
        %1342 = vmatprep.subr.mxu0 0.0
        %1343 = vmatpush1.msra.mxu0 0.0
        %1344 = vmatprep.subr.mxu0 0.0
        %1345 = vmatpush1.msra.mxu0 0.0
        %1346 = vmatprep.mubr.f32.mxu0 0.0
        %1347 = vmatmul.mubr.f32.gmra.mrb[0].mxu0 %v1277
        %v1348 = vpop.f32.mrb[0].mxu0
        %v1349 = vadd.f32 0.0, %v1348
        %v1350 = vpop.f32.mrb[0].mxu0
        %1351 = vmatprep.mubr.f32.mxu0 0.0
        %1352 = vmatmul.mubr.f32.gmra.mrb[0].mxu0 %v1280
        %v1353 = vpop.f32.mrb[0].mxu0
        %v1354 = vadd.f32 0.0, %v1353
        %v1355 = vpop.f32.mrb[0].mxu0
        %1356 = vdwg.mxu0
        %1357 = vrot.lane.b32.xlu0 %v934, 112
        %v1358 = vpop.permute.xlu0 %1357
        %1359 = vrot.lane.b32.xlu0 %v939, 112
        %v1360 = vpop.permute.xlu0 %1359
        %1361 = vrot.lane.b32.xlu0 %v934, 80
        %v1362 = vpop.permute.xlu0 %1361
        %1363 = vrot.lane.b32.xlu0 %v939, 80
        %v1364 = vpop.permute.xlu0 %1363
        %v1365 = vsel %vm950, %v1358, 0
        %v1367 = vsel %vm950, %v1360, 0
        %v1369 = vsel %vm950, %v1362, 0
        %v1371 = vsel %vm950, %v1364, 0
        %1373 = vmatprep.subr.mxu0 0.0
        %1374 = vmatpush1.xpose.msra.mxu0 %v1369
        %1375 = vmatprep.subr.mxu0 0.0
        %1376 = vmatpush1.xpose.msra.mxu0 %v1371
        %1377 = vmatprep.subr.mxu0 0.0
        %1378 = vmatpush1.xpose.msra.mxu0 0.0
        %1379 = vmatprep.subr.mxu0 0.0
        %1380 = vmatpush1.xpose.msra.mxu0 0.0
        %1381 = vmatprep.subr.mxu0 0.0
        %1382 = vmatpush1.xpose.msra.mxu0 0.0
        %1383 = vmatprep.subr.mxu0 0.0
        %1384 = vmatpush1.xpose.msra.mxu0 0.0
        %1385 = vmatprep.subr.mxu0 0.0
        %1386 = vmatpush1.xpose.msra.mxu0 0.0
        %1387 = vmatprep.subr.mxu0 0.0
        %1388 = vmatpush1.xpose.msra.mxu0 0.0
        %1389 = vmatprep.subr.mxu0 0.0
        %1390 = vmatpush1.xpose.msra.mxu0 0.0
        %1391 = vmatprep.subr.mxu0 0.0
        %1392 = vmatpush1.xpose.msra.mxu0 0.0
        %1393 = vmatprep.subr.mxu0 0.0
        %1394 = vmatpush1.xpose.msra.mxu0 0.0
        %1395 = vmatprep.subr.mxu0 0.0
        %1396 = vmatpush1.xpose.msra.mxu0 0.0
        %1397 = vmatprep.subr.mxu0 0.0
        %1398 = vmatpush1.xpose.msra.mxu0 0.0
        %1399 = vmatprep.subr.mxu0 0.0
        %1400 = vmatpush1.xpose.msra.mxu0 0.0
        %1401 = vmatprep.subr.mxu0 0.0
        %1402 = vmatpush1.xpose.msra.mxu0 0.0
        %1403 = vmatprep.subr.mxu0 0.0
        %1404 = vmatpush1.xpose.msra.mxu0 0.0
        %1405 = vmatprep.subr.mxu0 0.0
        %1406 = vmatpush1.xpose.msra.mxu0 0.0
        %1407 = vmatprep.subr.mxu0 0.0
        %1408 = vmatpush1.xpose.msra.mxu0 0.0
        %1409 = vmatprep.subr.mxu0 0.0
        %1410 = vmatpush1.xpose.msra.mxu0 0.0
        %1411 = vmatprep.subr.mxu0 0.0
        %1412 = vmatpush1.xpose.msra.mxu0 0.0
        %1413 = vmatprep.subr.mxu0 0.0
        %1414 = vmatpush1.xpose.msra.mxu0 0.0
        %1415 = vmatprep.subr.mxu0 0.0
        %1416 = vmatpush1.xpose.msra.mxu0 0.0
        %1417 = vmatprep.subr.mxu0 0.0
        %1418 = vmatpush1.xpose.msra.mxu0 0.0
        %1419 = vmatprep.subr.mxu0 0.0
        %1420 = vmatpush1.xpose.msra.mxu0 0.0
        %1421 = vmatprep.subr.mxu0 0.0
        %1422 = vmatpush1.xpose.msra.mxu0 0.0
        %1423 = vmatprep.subr.mxu0 0.0
        %1424 = vmatpush1.xpose.msra.mxu0 0.0
        %1425 = vmatprep.subr.mxu0 0.0
        %1426 = vmatpush1.xpose.msra.mxu0 0.0
        %1427 = vmatprep.subr.mxu0 0.0
        %1428 = vmatpush1.xpose.msra.mxu0 0.0
        %1429 = vmatprep.subr.mxu0 0.0
        %1430 = vmatpush1.xpose.msra.mxu0 0.0
        %1431 = vmatprep.subr.mxu0 0.0
        %1432 = vmatpush1.xpose.msra.mxu0 0.0
        %1433 = vmatprep.subr.mxu0 0.0
        %1434 = vmatpush1.xpose.msra.mxu0 0.0
        %1435 = vmatprep.subr.mxu0 0.0
        %1436 = vmatpush1.xpose.msra.mxu0 0.0
        %1437 = vmatprep.mubr.f32.mxu0 0.0
        %1438 = vmatmul.mubr.f32.gmra.mrb[0].mxu0 %v1365
        %v1439 = vpop.f32.mrb[0].mxu0
        %v1440 = vadd.f32 0.0, %v1439
        %v1441 = vpop.f32.mrb[0].mxu0
        %1442 = vmatprep.mubr.f32.mxu0 0.0
        %1443 = vmatmul.mubr.f32.gmra.mrb[0].mxu0 %v1367
        %v1444 = vpop.f32.mrb[0].mxu0
        %v1445 = vadd.f32 0.0, %v1444
        %v1446 = vpop.f32.mrb[0].mxu0
        %1447 = vdwg.mxu0
        %v1448 = vmul.f32 %v1440, 0.35355338
        %v1449 = vmul.f32 %v1445, 0.35355338
        %v1450 = vadd.f32 %v1448, %v942
        %v1451 = vadd.f32 %v1449, %v943
        %v1452 = vsel %vm1038, %v1450, -inf
        %1453 = vmax.xlane.f32.xlu0 %v1452
        %v1454 = vpop.xlane.xlu0 %1453
        %v1455 = vsel %vm1038, %v1451, -inf
        %1456 = vmax.xlane.f32.xlu0 %v1455
        %v1457 = vpop.xlane.xlu0 %1456
        %v1458 = vsub.f32 %v1450, %v1454
        %v1459 = vsub.f32 %v1451, %v1457
        %v1460 = vmul.f32 %v1458, 1.442695
        %v1461 = vpow.pop %v1460
        %v1462 = vmul.f32 %v1459, 1.442695
        %v1463 = vpow.pop %v1462
        %v1464 = vsel %vm1038, %v1461, 0.0
        %1465 = vadd.xlane.f32.xlu0 %v1464
        %v1466 = vpop.xlane.xlu0 %1465
        %v1467 = vsel %vm1038, %v1463, 0.0
        %1468 = vadd.xlane.f32.xlu0 %v1467
        %v1469 = vpop.xlane.xlu0 %1468
        %v1470 = vrcp.pop %v1466
        %v1471 = vrcp.pop %v1469
        %v1472 = vmul.f32 %v1461, %v1470
        %v1473 = vmul.f32 %v1463, %v1471
        %s1474 = scalar_lea.vmem %s805, 32 [#allocation14]
        %1475 = vst.msk [vmem:[%s1474] sm:$0xff] %vm1038, %v1472
        %1476 = vst.msk [vmem:[%s1474 + $0x8] sm:$0xff] %vm1038, %v1473
        %1477 = vrot.lane.b32.xlu0 %v934, 48
        %v1478 = vpop.permute.xlu0 %1477
        %1479 = vrot.lane.b32.xlu0 %v939, 48
        %v1480 = vpop.permute.xlu0 %1479
        %v1484 = vsel %vm1038, %v1472, 0
        %v1487 = vsel %vm1038, %v1473, 0
        %1489 = vmatprep.subr.mxu0 0.0
        %1490 = vmatpush1.msra.mxu0 %v1478
        %1491 = vmatprep.subr.mxu0 0.0
        %1492 = vmatpush1.msra.mxu0 %v1480
        %1493 = vmatprep.subr.mxu0 0.0
        %1494 = vmatpush1.msra.mxu0 0.0
        %1495 = vmatprep.subr.mxu0 0.0
        %1496 = vmatpush1.msra.mxu0 0.0
        %1497 = vmatprep.subr.mxu0 0.0
        %1498 = vmatpush1.msra.mxu0 0.0
        %1499 = vmatprep.subr.mxu0 0.0
        %1500 = vmatpush1.msra.mxu0 0.0
        %1501 = vmatprep.subr.mxu0 0.0
        %1502 = vmatpush1.msra.mxu0 0.0
        %1503 = vmatprep.subr.mxu0 0.0
        %1504 = vmatpush1.msra.mxu0 0.0
        %1505 = vmatprep.subr.mxu0 0.0
        %1506 = vmatpush1.msra.mxu0 0.0
        %1507 = vmatprep.subr.mxu0 0.0
        %1508 = vmatpush1.msra.mxu0 0.0
        %1509 = vmatprep.subr.mxu0 0.0
        %1510 = vmatpush1.msra.mxu0 0.0
        %1511 = vmatprep.subr.mxu0 0.0
        %1512 = vmatpush1.msra.mxu0 0.0
        %1513 = vmatprep.subr.mxu0 0.0
        %1514 = vmatpush1.msra.mxu0 0.0
        %1515 = vmatprep.subr.mxu0 0.0
        %1516 = vmatpush1.msra.mxu0 0.0
        %1517 = vmatprep.subr.mxu0 0.0
        %1518 = vmatpush1.msra.mxu0 0.0
        %1519 = vmatprep.subr.mxu0 0.0
        %1520 = vmatpush1.msra.mxu0 0.0
        %1521 = vmatprep.subr.mxu0 0.0
        %1522 = vmatpush1.msra.mxu0 0.0
        %1523 = vmatprep.subr.mxu0 0.0
        %1524 = vmatpush1.msra.mxu0 0.0
        %1525 = vmatprep.subr.mxu0 0.0
        %1526 = vmatpush1.msra.mxu0 0.0
        %1527 = vmatprep.subr.mxu0 0.0
        %1528 = vmatpush1.msra.mxu0 0.0
        %1529 = vmatprep.subr.mxu0 0.0
        %1530 = vmatpush1.msra.mxu0 0.0
        %1531 = vmatprep.subr.mxu0 0.0
        %1532 = vmatpush1.msra.mxu0 0.0
        %1533 = vmatprep.subr.mxu0 0.0
        %1534 = vmatpush1.msra.mxu0 0.0
        %1535 = vmatprep.subr.mxu0 0.0
        %1536 = vmatpush1.msra.mxu0 0.0
        %1537 = vmatprep.subr.mxu0 0.0
        %1538 = vmatpush1.msra.mxu0 0.0
        %1539 = vmatprep.subr.mxu0 0.0
        %1540 = vmatpush1.msra.mxu0 0.0
        %1541 = vmatprep.subr.mxu0 0.0
        %1542 = vmatpush1.msra.mxu0 0.0
        %1543 = vmatprep.subr.mxu0 0.0
        %1544 = vmatpush1.msra.mxu0 0.0
        %1545 = vmatprep.subr.mxu0 0.0
        %1546 = vmatpush1.msra.mxu0 0.0
        %1547 = vmatprep.subr.mxu0 0.0
        %1548 = vmatpush1.msra.mxu0 0.0
        %1549 = vmatprep.subr.mxu0 0.0
        %1550 = vmatpush1.msra.mxu0 0.0
        %1551 = vmatprep.subr.mxu0 0.0
        %1552 = vmatpush1.msra.mxu0 0.0
        %1553 = vmatprep.mubr.f32.mxu0 0.0
        %1554 = vmatmul.mubr.f32.gmra.mrb[0].mxu0 %v1484
        %v1555 = vpop.f32.mrb[0].mxu0
        %v1556 = vadd.f32 0.0, %v1555
        %v1557 = vpop.f32.mrb[0].mxu0
        %1558 = vmatprep.mubr.f32.mxu0 0.0
        %1559 = vmatmul.mubr.f32.gmra.mrb[0].mxu0 %v1487
        %v1560 = vpop.f32.mrb[0].mxu0
        %v1561 = vadd.f32 0.0, %v1560
        %v1562 = vpop.f32.mrb[0].mxu0
        %1563 = vdwg.mxu0
        %1564 = vrot.lane.b32.xlu0 %v934, 104
        %v1565 = vpop.permute.xlu0 %1564
        %1566 = vrot.lane.b32.xlu0 %v939, 104
        %v1567 = vpop.permute.xlu0 %1566
        %1568 = vrot.lane.b32.xlu0 %v934, 72
        %v1569 = vpop.permute.xlu0 %1568
        %1570 = vrot.lane.b32.xlu0 %v939, 72
        %v1571 = vpop.permute.xlu0 %1570
        %v1572 = vsel %vm950, %v1565, 0
        %v1574 = vsel %vm950, %v1567, 0
        %v1576 = vsel %vm950, %v1569, 0
        %v1578 = vsel %vm950, %v1571, 0
        %1580 = vmatprep.subr.mxu0 0.0
        %1581 = vmatpush1.xpose.msra.mxu0 %v1576
        %1582 = vmatprep.subr.mxu0 0.0
        %1583 = vmatpush1.xpose.msra.mxu0 %v1578
        %1584 = vmatprep.subr.mxu0 0.0
        %1585 = vmatpush1.xpose.msra.mxu0 0.0
        %1586 = vmatprep.subr.mxu0 0.0
        %1587 = vmatpush1.xpose.msra.mxu0 0.0
        %1588 = vmatprep.subr.mxu0 0.0
        %1589 = vmatpush1.xpose.msra.mxu0 0.0
        %1590 = vmatprep.subr.mxu0 0.0
        %1591 = vmatpush1.xpose.msra.mxu0 0.0
        %1592 = vmatprep.subr.mxu0 0.0
        %1593 = vmatpush1.xpose.msra.mxu0 0.0
        %1594 = vmatprep.subr.mxu0 0.0
        %1595 = vmatpush1.xpose.msra.mxu0 0.0
        %1596 = vmatprep.subr.mxu0 0.0
        %1597 = vmatpush1.xpose.msra.mxu0 0.0
        %1598 = vmatprep.subr.mxu0 0.0
        %1599 = vmatpush1.xpose.msra.mxu0 0.0
        %1600 = vmatprep.subr.mxu0 0.0
        %1601 = vmatpush1.xpose.msra.mxu0 0.0
        %1602 = vmatprep.subr.mxu0 0.0
        %1603 = vmatpush1.xpose.msra.mxu0 0.0
        %1604 = vmatprep.subr.mxu0 0.0
        %1605 = vmatpush1.xpose.msra.mxu0 0.0
        %1606 = vmatprep.subr.mxu0 0.0
        %1607 = vmatpush1.xpose.msra.mxu0 0.0
        %1608 = vmatprep.subr.mxu0 0.0
        %1609 = vmatpush1.xpose.msra.mxu0 0.0
        %1610 = vmatprep.subr.mxu0 0.0
        %1611 = vmatpush1.xpose.msra.mxu0 0.0
        %1612 = vmatprep.subr.mxu0 0.0
        %1613 = vmatpush1.xpose.msra.mxu0 0.0
        %1614 = vmatprep.subr.mxu0 0.0
        %1615 = vmatpush1.xpose.msra.mxu0 0.0
        %1616 = vmatprep.subr.mxu0 0.0
        %1617 = vmatpush1.xpose.msra.mxu0 0.0
        %1618 = vmatprep.subr.mxu0 0.0
        %1619 = vmatpush1.xpose.msra.mxu0 0.0
        %1620 = vmatprep.subr.mxu0 0.0
        %1621 = vmatpush1.xpose.msra.mxu0 0.0
        %1622 = vmatprep.subr.mxu0 0.0
        %1623 = vmatpush1.xpose.msra.mxu0 0.0
        %1624 = vmatprep.subr.mxu0 0.0
        %1625 = vmatpush1.xpose.msra.mxu0 0.0
        %1626 = vmatprep.subr.mxu0 0.0
        %1627 = vmatpush1.xpose.msra.mxu0 0.0
        %1628 = vmatprep.subr.mxu0 0.0
        %1629 = vmatpush1.xpose.msra.mxu0 0.0
        %1630 = vmatprep.subr.mxu0 0.0
        %1631 = vmatpush1.xpose.msra.mxu0 0.0
        %1632 = vmatprep.subr.mxu0 0.0
        %1633 = vmatpush1.xpose.msra.mxu0 0.0
        %1634 = vmatprep.subr.mxu0 0.0
        %1635 = vmatpush1.xpose.msra.mxu0 0.0
        %1636 = vmatprep.subr.mxu0 0.0
        %1637 = vmatpush1.xpose.msra.mxu0 0.0
        %1638 = vmatprep.subr.mxu0 0.0
        %1639 = vmatpush1.xpose.msra.mxu0 0.0
        %1640 = vmatprep.subr.mxu0 0.0
        %1641 = vmatpush1.xpose.msra.mxu0 0.0
        %1642 = vmatprep.subr.mxu0 0.0
        %1643 = vmatpush1.xpose.msra.mxu0 0.0
        %1644 = vmatprep.mubr.f32.mxu0 0.0
        %1645 = vmatmul.mubr.f32.gmra.mrb[0].mxu0 %v1572
        %v1646 = vpop.f32.mrb[0].mxu0
        %v1647 = vadd.f32 0.0, %v1646
        %v1648 = vpop.f32.mrb[0].mxu0
        %1649 = vmatprep.mubr.f32.mxu0 0.0
        %1650 = vmatmul.mubr.f32.gmra.mrb[0].mxu0 %v1574
        %v1651 = vpop.f32.mrb[0].mxu0
        %v1652 = vadd.f32 0.0, %v1651
        %v1653 = vpop.f32.mrb[0].mxu0
        %1654 = vdwg.mxu0
        %v1655 = vmul.f32 %v1647, 0.35355338
        %v1656 = vmul.f32 %v1652, 0.35355338
        %v1657 = vadd.f32 %v1655, %v942
        %v1658 = vadd.f32 %v1656, %v943
        %v1659 = vsel %vm1038, %v1657, -inf
        %1660 = vmax.xlane.f32.xlu0 %v1659
        %v1661 = vpop.xlane.xlu0 %1660
        %v1662 = vsel %vm1038, %v1658, -inf
        %1663 = vmax.xlane.f32.xlu0 %v1662
        %v1664 = vpop.xlane.xlu0 %1663
        %v1665 = vsub.f32 %v1657, %v1661
        %v1666 = vsub.f32 %v1658, %v1664
        %v1667 = vmul.f32 %v1665, 1.442695
        %v1668 = vpow.pop %v1667
        %v1669 = vmul.f32 %v1666, 1.442695
        %v1670 = vpow.pop %v1669
        %v1671 = vsel %vm1038, %v1668, 0.0
        %1672 = vadd.xlane.f32.xlu0 %v1671
        %v1673 = vpop.xlane.xlu0 %1672
        %v1674 = vsel %vm1038, %v1670, 0.0
        %1675 = vadd.xlane.f32.xlu0 %v1674
        %v1676 = vpop.xlane.xlu0 %1675
        %v1677 = vrcp.pop %v1673
        %v1678 = vrcp.pop %v1676
        %v1679 = vmul.f32 %v1668, %v1677
        %v1680 = vmul.f32 %v1670, %v1678
        %s1681 = scalar_lea.vmem %s805, 48 [#allocation14]
        %1682 = vst.msk [vmem:[%s1681] sm:$0xff] %vm1038, %v1679
        %1683 = vst.msk [vmem:[%s1681 + $0x8] sm:$0xff] %vm1038, %v1680
        %1684 = vrot.lane.b32.xlu0 %v934, 40
        %v1685 = vpop.permute.xlu0 %1684
        %1686 = vrot.lane.b32.xlu0 %v939, 40
        %v1687 = vpop.permute.xlu0 %1686
        %v1691 = vsel %vm1038, %v1679, 0
        %v1694 = vsel %vm1038, %v1680, 0
        %1696 = vmatprep.subr.mxu0 0.0
        %1697 = vmatpush1.msra.mxu0 %v1685
        %1698 = vmatprep.subr.mxu0 0.0
        %1699 = vmatpush1.msra.mxu0 %v1687
        %1700 = vmatprep.subr.mxu0 0.0
        %1701 = vmatpush1.msra.mxu0 0.0
        %1702 = vmatprep.subr.mxu0 0.0
        %1703 = vmatpush1.msra.mxu0 0.0
        %1704 = vmatprep.subr.mxu0 0.0
        %1705 = vmatpush1.msra.mxu0 0.0
        %1706 = vmatprep.subr.mxu0 0.0
        %1707 = vmatpush1.msra.mxu0 0.0
        %1708 = vmatprep.subr.mxu0 0.0
        %1709 = vmatpush1.msra.mxu0 0.0
        %1710 = vmatprep.subr.mxu0 0.0
        %1711 = vmatpush1.msra.mxu0 0.0
        %1712 = vmatprep.subr.mxu0 0.0
        %1713 = vmatpush1.msra.mxu0 0.0
        %1714 = vmatprep.subr.mxu0 0.0
        %1715 = vmatpush1.msra.mxu0 0.0
        %1716 = vmatprep.subr.mxu0 0.0
        %1717 = vmatpush1.msra.mxu0 0.0
        %1718 = vmatprep.subr.mxu0 0.0
        %1719 = vmatpush1.msra.mxu0 0.0
        %1720 = vmatprep.subr.mxu0 0.0
        %1721 = vmatpush1.msra.mxu0 0.0
        %1722 = vmatprep.subr.mxu0 0.0
        %1723 = vmatpush1.msra.mxu0 0.0
        %1724 = vmatprep.subr.mxu0 0.0
        %1725 = vmatpush1.msra.mxu0 0.0
        %1726 = vmatprep.subr.mxu0 0.0
        %1727 = vmatpush1.msra.mxu0 0.0
        %1728 = vmatprep.subr.mxu0 0.0
        %1729 = vmatpush1.msra.mxu0 0.0
        %1730 = vmatprep.subr.mxu0 0.0
        %1731 = vmatpush1.msra.mxu0 0.0
        %1732 = vmatprep.subr.mxu0 0.0
        %1733 = vmatpush1.msra.mxu0 0.0
        %1734 = vmatprep.subr.mxu0 0.0
        %1735 = vmatpush1.msra.mxu0 0.0
        %1736 = vmatprep.subr.mxu0 0.0
        %1737 = vmatpush1.msra.mxu0 0.0
        %1738 = vmatprep.subr.mxu0 0.0
        %1739 = vmatpush1.msra.mxu0 0.0
        %1740 = vmatprep.subr.mxu0 0.0
        %1741 = vmatpush1.msra.mxu0 0.0
        %1742 = vmatprep.subr.mxu0 0.0
        %1743 = vmatpush1.msra.mxu0 0.0
        %1744 = vmatprep.subr.mxu0 0.0
        %1745 = vmatpush1.msra.mxu0 0.0
        %1746 = vmatprep.subr.mxu0 0.0
        %1747 = vmatpush1.msra.mxu0 0.0
        %1748 = vmatprep.subr.mxu0 0.0
        %1749 = vmatpush1.msra.mxu0 0.0
        %1750 = vmatprep.subr.mxu0 0.0
        %1751 = vmatpush1.msra.mxu0 0.0
        %1752 = vmatprep.subr.mxu0 0.0
        %1753 = vmatpush1.msra.mxu0 0.0
        %1754 = vmatprep.subr.mxu0 0.0
        %1755 = vmatpush1.msra.mxu0 0.0
        %1756 = vmatprep.subr.mxu0 0.0
        %1757 = vmatpush1.msra.mxu0 0.0
        %1758 = vmatprep.subr.mxu0 0.0
        %1759 = vmatpush1.msra.mxu0 0.0
        %1760 = vmatprep.mubr.f32.mxu0 0.0
        %1761 = vmatmul.mubr.f32.gmra.mrb[0].mxu0 %v1691
        %v1762 = vpop.f32.mrb[0].mxu0
        %v1763 = vadd.f32 0.0, %v1762
        %v1764 = vpop.f32.mrb[0].mxu0
        %1765 = vmatprep.mubr.f32.mxu0 0.0
        %1766 = vmatmul.mubr.f32.gmra.mrb[0].mxu0 %v1694
        %v1767 = vpop.f32.mrb[0].mxu0
        %v1768 = vadd.f32 0.0, %v1767
        %v1769 = vpop.f32.mrb[0].mxu0
        %1770 = vdwg.mxu0
        %1773 = vrot.lane.b32.xlu0 %v1349, 8
        %v1774 = vpop.permute.xlu0 %1773
        %1775 = vrot.lane.b32.xlu0 %v1354, 8
        %v1776 = vpop.permute.xlu0 %1775
        %1781 = vrot.lane.b32.xlu0 %v1556, 16
        %v1782 = vpop.permute.xlu0 %1781
        %1783 = vrot.lane.b32.xlu0 %v1561, 16
        %v1784 = vpop.permute.xlu0 %1783
        %1789 = vrot.lane.b32.xlu0 %v1763, 24
        %v1790 = vpop.permute.xlu0 %1789
        %1791 = vrot.lane.b32.xlu0 %v1768, 24
        %v1792 = vpop.permute.xlu0 %1791
        %v1795 = vsel %vm950, %v1142, %v1774
        %v1796 = vsel %vm950, %v1147, %v1776
        %v1797 = vsel %vm1038, %v1795, %v1782
        %v1798 = vsel %vm1038, %v1796, %v1784
        %vm1799 = vcmask 195584
        %v1800 = vsel %vm1799, %v1797, %v1790
        %v1801 = vsel %vm1799, %v1798, %v1792
        %v1802 = vld [vmem:[%s818] sm:$0xff]
        %v1803 = vld [vmem:[%s818 + $0x8] sm:$0xff]
        %v1804 = vld [vmem:[%s818 + $0x10] sm:$0xff]
        %v1805 = vld [vmem:[%s818 + $0x18] sm:$0xff]
        %v1806 = vld [vmem:[%s686] sm:$0x1]
        %v1808 = vlaneseq
        %v1809 = vshrl.u32 %v1808, 7
        %v1810 = vsub.s32 0, %v1809
        %v1811 = vrot.slane %v1806, %v1810
        %v1814 = vsel %vm860, %v1800, 0
        %v1817 = vsel %vm860, %v1801, 0
        %1819 = vmatprep.subr.mxu0 0.0
        %1820 = vmatpush1.msra.mxu0 %v1802
        %1821 = vmatprep.subr.mxu0 0.0
        %1822 = vmatpush1.msra.mxu0 %v1803
        %1823 = vmatprep.subr.mxu0 0.0
        %1824 = vmatpush1.msra.mxu0 %v1804
        %1825 = vmatprep.subr.mxu0 0.0
        %1826 = vmatpush1.msra.mxu0 %v1805
        %1827 = vmatprep.subr.mxu0 0.0
        %1828 = vmatpush1.msra.mxu0 0.0
        %1829 = vmatprep.subr.mxu0 0.0
        %1830 = vmatpush1.msra.mxu0 0.0
        %1831 = vmatprep.subr.mxu0 0.0
        %1832 = vmatpush1.msra.mxu0 0.0
        %1833 = vmatprep.subr.mxu0 0.0
        %1834 = vmatpush1.msra.mxu0 0.0
        %1835 = vmatprep.subr.mxu0 0.0
        %1836 = vmatpush1.msra.mxu0 0.0
        %1837 = vmatprep.subr.mxu0 0.0
        %1838 = vmatpush1.msra.mxu0 0.0
        %1839 = vmatprep.subr.mxu0 0.0
        %1840 = vmatpush1.msra.mxu0 0.0
        %1841 = vmatprep.subr.mxu0 0.0
        %1842 = vmatpush1.msra.mxu0 0.0
        %1843 = vmatprep.subr.mxu0 0.0
        %1844 = vmatpush1.msra.mxu0 0.0
        %1845 = vmatprep.subr.mxu0 0.0
        %1846 = vmatpush1.msra.mxu0 0.0
        %1847 = vmatprep.subr.mxu0 0.0
        %1848 = vmatpush1.msra.mxu0 0.0
        %1849 = vmatprep.subr.mxu0 0.0
        %1850 = vmatpush1.msra.mxu0 0.0
        %1851 = vmatprep.subr.mxu0 0.0
        %1852 = vmatpush1.msra.mxu0 0.0
        %1853 = vmatprep.subr.mxu0 0.0
        %1854 = vmatpush1.msra.mxu0 0.0
        %1855 = vmatprep.subr.mxu0 0.0
        %1856 = vmatpush1.msra.mxu0 0.0
        %1857 = vmatprep.subr.mxu0 0.0
        %1858 = vmatpush1.msra.mxu0 0.0
        %1859 = vmatprep.subr.mxu0 0.0
        %1860 = vmatpush1.msra.mxu0 0.0
        %1861 = vmatprep.subr.mxu0 0.0
        %1862 = vmatpush1.msra.mxu0 0.0
        %1863 = vmatprep.subr.mxu0 0.0
        %1864 = vmatpush1.msra.mxu0 0.0
        %1865 = vmatprep.subr.mxu0 0.0
        %1866 = vmatpush1.msra.mxu0 0.0
        %1867 = vmatprep.subr.mxu0 0.0
        %1868 = vmatpush1.msra.mxu0 0.0
        %1869 = vmatprep.subr.mxu0 0.0
        %1870 = vmatpush1.msra.mxu0 0.0
        %1871 = vmatprep.subr.mxu0 0.0
        %1872 = vmatpush1.msra.mxu0 0.0
        %1873 = vmatprep.subr.mxu0 0.0
        %1874 = vmatpush1.msra.mxu0 0.0
        %1875 = vmatprep.subr.mxu0 0.0
        %1876 = vmatpush1.msra.mxu0 0.0
        %1877 = vmatprep.subr.mxu0 0.0
        %1878 = vmatpush1.msra.mxu0 0.0
        %1879 = vmatprep.subr.mxu0 0.0
        %1880 = vmatpush1.msra.mxu0 0.0
        %1881 = vmatprep.subr.mxu0 0.0
        %1882 = vmatpush1.msra.mxu0 0.0
        %1883 = vmatprep.mubr.f32.mxu0 0.0
        %1884 = vmatmul.mubr.f32.gmra.mrb[0].mxu0 %v1814
        %v1885 = vpop.f32.mrb[0].mxu0
        %v1886 = vadd.f32 %v1811, %v1885
        %v1887 = vpop.f32.mrb[0].mxu0
        %1888 = vmatprep.mubr.f32.mxu0 0.0
        %1889 = vmatmul.mubr.f32.gmra.mrb[0].mxu0 %v1817
        %v1890 = vpop.f32.mrb[0].mxu0
        %v1891 = vadd.f32 %v1811, %v1890
        %v1892 = vpop.f32.mrb[0].mxu0
        %1893 = vdwg.mxu0
        %v1894 = vadd.f32 %v1886, %v847
        %v1895 = vadd.f32 %v1891, %v848
        %v1896 = vld [vmem:[%s694] sm:$0x1]
        %v1897 = vld [vmem:[%s702] sm:$0x1]
        %v1898 = vsel %vm860, %v1894, 0.0
        %1899 = vadd.xlane.f32.xlu0 %v1898
        %v1900 = vpop.xlane.xlu0 %1899
        %v1901 = vsel %vm860, %v1895, 0.0
        %1902 = vadd.xlane.f32.xlu0 %v1901
        %v1903 = vpop.xlane.xlu0 %1902
        %v1904 = vrcp.pop 32.0
        %v1905 = vmul.f32 %v1900, %v1904
        %v1906 = vmul.f32 %v1903, %v1904
        %v1907 = vsub.f32 %v1894, %v1905
        %v1908 = vsub.f32 %v1895, %v1906
        %v1909 = vmul.f32 %v1907, %v1907
        %v1910 = vmul.f32 %v1908, %v1908
        %v1911 = vsel %vm860, %v1909, 0.0
        %1912 = vadd.xlane.f32.xlu0 %v1911
        %v1913 = vpop.xlane.xlu0 %1912
        %v1914 = vsel %vm860, %v1910, 0.0
        %1915 = vadd.xlane.f32.xlu0 %v1914
        %v1916 = vpop.xlane.xlu0 %1915
        %v1917 = vmul.f32 %v1913, %v1904
        %v1918 = vmul.f32 %v1916, %v1904
        %v1919 = vadd.f32 %v1917, 1e-12
        %v1920 = vadd.f32 %v1918, 1e-12
        %v1921 = vrsqrt.pop %v1919
        %v1922 = vrsqrt.pop %v1920
        %v1923 = vmul.f32 %v1907, %v1921
        %v1924 = vmul.f32 %v1908, %v1922
        %v1926 = vlaneseq
        %v1927 = vshrl.u32 %v1926, 7
        %v1928 = vsub.s32 0, %v1927
        %v1929 = vrot.slane %v1896, %v1928
        %v1931 = vmul.f32 %v1923, %v1929
        %v1932 = vmul.f32 %v1924, %v1929
        %v1934 = vlaneseq
        %v1935 = vshrl.u32 %v1934, 7
        %v1936 = vsub.s32 0, %v1935
        %v1937 = vrot.slane %v1897, %v1936
        %v1939 = vadd.f32 %v1931, %v1937
        %v1940 = vadd.f32 %v1932, %v1937
        %v1941 = vld [vmem:[%s823] sm:$0xff]
        %v1942 = vld [vmem:[%s823 + $0x8] sm:$0xff]
        %v1943 = vld [vmem:[%s823 + $0x10] sm:$0xff]
        %v1944 = vld [vmem:[%s823 + $0x18] sm:$0xff]
        %v1945 = vld [vmem:[%s710] sm:$0x1]
        %v1947 = vlaneseq
        %v1948 = vshrl.u32 %v1947, 7
        %v1949 = vsub.s32 0, %v1948
        %v1950 = vrot.slane %v1945, %v1949
        %v1953 = vsel %vm860, %v1939, 0
        %v1956 = vsel %vm860, %v1940, 0
        %1958 = vmatprep.subr.mxu0 0.0
        %1959 = vmatpush1.msra.mxu0 %v1941
        %1960 = vmatprep.subr.mxu0 0.0
        %1961 = vmatpush1.msra.mxu0 %v1942
        %1962 = vmatprep.subr.mxu0 0.0
        %1963 = vmatpush1.msra.mxu0 %v1943
        %1964 = vmatprep.subr.mxu0 0.0
        %1965 = vmatpush1.msra.mxu0 %v1944
        %1966 = vmatprep.subr.mxu0 0.0
        %1967 = vmatpush1.msra.mxu0 0.0
        %1968 = vmatprep.subr.mxu0 0.0
        %1969 = vmatpush1.msra.mxu0 0.0
        %1970 = vmatprep.subr.mxu0 0.0
        %1971 = vmatpush1.msra.mxu0 0.0
        %1972 = vmatprep.subr.mxu0 0.0
        %1973 = vmatpush1.msra.mxu0 0.0
        %1974 = vmatprep.subr.mxu0 0.0
        %1975 = vmatpush1.msra.mxu0 0.0
        %1976 = vmatprep.subr.mxu0 0.0
        %1977 = vmatpush1.msra.mxu0 0.0
        %1978 = vmatprep.subr.mxu0 0.0
        %1979 = vmatpush1.msra.mxu0 0.0
        %1980 = vmatprep.subr.mxu0 0.0
        %1981 = vmatpush1.msra.mxu0 0.0
        %1982 = vmatprep.subr.mxu0 0.0
        %1983 = vmatpush1.msra.mxu0 0.0
        %1984 = vmatprep.subr.mxu0 0.0
        %1985 = vmatpush1.msra.mxu0 0.0
        %1986 = vmatprep.subr.mxu0 0.0
        %1987 = vmatpush1.msra.mxu0 0.0
        %1988 = vmatprep.subr.mxu0 0.0
        %1989 = vmatpush1.msra.mxu0 0.0
        %1990 = vmatprep.subr.mxu0 0.0
        %1991 = vmatpush1.msra.mxu0 0.0
        %1992 = vmatprep.subr.mxu0 0.0
        %1993 = vmatpush1.msra.mxu0 0.0
        %1994 = vmatprep.subr.mxu0 0.0
        %1995 = vmatpush1.msra.mxu0 0.0
        %1996 = vmatprep.subr.mxu0 0.0
        %1997 = vmatpush1.msra.mxu0 0.0
        %1998 = vmatprep.subr.mxu0 0.0
        %1999 = vmatpush1.msra.mxu0 0.0
        %2000 = vmatprep.subr.mxu0 0.0
        %2001 = vmatpush1.msra.mxu0 0.0
        %2002 = vmatprep.subr.mxu0 0.0
        %2003 = vmatpush1.msra.mxu0 0.0
        %2004 = vmatprep.subr.mxu0 0.0
        %2005 = vmatpush1.msra.mxu0 0.0
        %2006 = vmatprep.subr.mxu0 0.0
        %2007 = vmatpush1.msra.mxu0 0.0
        %2008 = vmatprep.subr.mxu0 0.0
        %2009 = vmatpush1.msra.mxu0 0.0
        %2010 = vmatprep.subr.mxu0 0.0
        %2011 = vmatpush1.msra.mxu0 0.0
        %2012 = vmatprep.subr.mxu0 0.0
        %2013 = vmatpush1.msra.mxu0 0.0
        %2014 = vmatprep.subr.mxu0 0.0
        %2015 = vmatpush1.msra.mxu0 0.0
        %2016 = vmatprep.subr.mxu0 0.0
        %2017 = vmatpush1.msra.mxu0 0.0
        %2018 = vmatprep.subr.mxu0 0.0
        %2019 = vmatpush1.msra.mxu0 0.0
        %2020 = vmatprep.subr.mxu0 0.0
        %2021 = vmatpush1.msra.mxu0 0.0
        %2022 = vmatprep.mubr.f32.mxu0 0.0
        %2023 = vmatmul.mubr.f32.gmra.mrb[0].mxu0 %v1953
        %v2024 = vpop.f32.mrb[0].mxu0
        %v2025 = vadd.f32 %v1950, %v2024
        %v2026 = vpop.f32.mrb[0].mxu0
        %2027 = vmatprep.mubr.f32.mxu0 0.0
        %2028 = vmatmul.mubr.f32.gmra.mrb[0].mxu0 %v1956
        %v2029 = vpop.f32.mrb[0].mxu0
        %v2030 = vadd.f32 %v1950, %v2029
        %v2031 = vpop.f32.mrb[0].mxu0
        %2032 = vdwg.mxu0
        %v2033 = vmax.f32 %v2025, 0.0
        %v2034 = vmax.f32 %v2030, 0.0
        %v2035 = vld [vmem:[%s828] sm:$0xff]
        %v2036 = vld [vmem:[%s828 + $0x8] sm:$0xff]
        %v2037 = vld [vmem:[%s828 + $0x10] sm:$0xff]
        %v2038 = vld [vmem:[%s828 + $0x18] sm:$0xff]
        %v2039 = vld [vmem:[%s828 + $0x20] sm:$0xff]
        %v2040 = vld [vmem:[%s828 + $0x28] sm:$0xff]
        %v2041 = vld [vmem:[%s828 + $0x30] sm:$0xff]
        %v2042 = vld [vmem:[%s828 + $0x38] sm:$0xff]
        %v2043 = vld [vmem:[%s831] sm:$0x1]
        %v2045 = vlaneseq
        %v2046 = vshrl.u32 %v2045, 7
        %v2047 = vsub.s32 0, %v2046
        %v2048 = vrot.slane %v2043, %v2047
        %vm2050 = vcmask 523264
        %v2052 = vsel %vm2050, %v2033, 0
        %v2055 = vsel %vm2050, %v2034, 0
        %2057 = vmatprep.subr.mxu0 0.0
        %2058 = vmatpush1.msra.mxu0 %v2035
        %2059 = vmatprep.subr.mxu0 0.0
        %2060 = vmatpush1.msra.mxu0 %v2036
        %2061 = vmatprep.subr.mxu0 0.0
        %2062 = vmatpush1.msra.mxu0 %v2037
        %2063 = vmatprep.subr.mxu0 0.0
        %2064 = vmatpush1.msra.mxu0 %v2038
        %2065 = vmatprep.subr.mxu0 0.0
        %2066 = vmatpush1.msra.mxu0 %v2039
        %2067 = vmatprep.subr.mxu0 0.0
        %2068 = vmatpush1.msra.mxu0 %v2040
        %2069 = vmatprep.subr.mxu0 0.0
        %2070 = vmatpush1.msra.mxu0 %v2041
        %2071 = vmatprep.subr.mxu0 0.0
        %2072 = vmatpush1.msra.mxu0 %v2042
        %2073 = vmatprep.subr.mxu0 0.0
        %2074 = vmatpush1.msra.mxu0 0.0
        %2075 = vmatprep.subr.mxu0 0.0
        %2076 = vmatpush1.msra.mxu0 0.0
        %2077 = vmatprep.subr.mxu0 0.0
        %2078 = vmatpush1.msra.mxu0 0.0
        %2079 = vmatprep.subr.mxu0 0.0
        %2080 = vmatpush1.msra.mxu0 0.0
        %2081 = vmatprep.subr.mxu0 0.0
        %2082 = vmatpush1.msra.mxu0 0.0
        %2083 = vmatprep.subr.mxu0 0.0
        %2084 = vmatpush1.msra.mxu0 0.0
        %2085 = vmatprep.subr.mxu0 0.0
        %2086 = vmatpush1.msra.mxu0 0.0
        %2087 = vmatprep.subr.mxu0 0.0
        %2088 = vmatpush1.msra.mxu0 0.0
        %2089 = vmatprep.subr.mxu0 0.0
        %2090 = vmatpush1.msra.mxu0 0.0
        %2091 = vmatprep.subr.mxu0 0.0
        %2092 = vmatpush1.msra.mxu0 0.0
        %2093 = vmatprep.subr.mxu0 0.0
        %2094 = vmatpush1.msra.mxu0 0.0
        %2095 = vmatprep.subr.mxu0 0.0
        %2096 = vmatpush1.msra.mxu0 0.0
        %2097 = vmatprep.subr.mxu0 0.0
        %2098 = vmatpush1.msra.mxu0 0.0
        %2099 = vmatprep.subr.mxu0 0.0
        %2100 = vmatpush1.msra.mxu0 0.0
        %2101 = vmatprep.subr.mxu0 0.0
        %2102 = vmatpush1.msra.mxu0 0.0
        %2103 = vmatprep.subr.mxu0 0.0
        %2104 = vmatpush1.msra.mxu0 0.0
        %2105 = vmatprep.subr.mxu0 0.0
        %2106 = vmatpush1.msra.mxu0 0.0
        %2107 = vmatprep.subr.mxu0 0.0
        %2108 = vmatpush1.msra.mxu0 0.0
        %2109 = vmatprep.subr.mxu0 0.0
        %2110 = vmatpush1.msra.mxu0 0.0
        %2111 = vmatprep.subr.mxu0 0.0
        %2112 = vmatpush1.msra.mxu0 0.0
        %2113 = vmatprep.subr.mxu0 0.0
        %2114 = vmatpush1.msra.mxu0 0.0
        %2115 = vmatprep.subr.mxu0 0.0
        %2116 = vmatpush1.msra.mxu0 0.0
        %2117 = vmatprep.subr.mxu0 0.0
        %2118 = vmatpush1.msra.mxu0 0.0
        %2119 = vmatprep.subr.mxu0 0.0
        %2120 = vmatpush1.msra.mxu0 0.0
        %2121 = vmatprep.mubr.f32.mxu0 0.0
        %2122 = vmatmul.mubr.f32.gmra.mrb[0].mxu0 %v2052
        %v2123 = vpop.f32.mrb[0].mxu0
        %v2124 = vadd.f32 %v2048, %v2123
        %v2125 = vpop.f32.mrb[0].mxu0
        %2126 = vmatprep.mubr.f32.mxu0 0.0
        %2127 = vmatmul.mubr.f32.gmra.mrb[0].mxu0 %v2055
        %v2128 = vpop.f32.mrb[0].mxu0
        %v2129 = vadd.f32 %v2048, %v2128
        %v2130 = vpop.f32.mrb[0].mxu0
        %2131 = vdwg.mxu0
        %v2132 = vadd.f32 %v2124, %v1939
        %v2133 = vadd.f32 %v2129, %v1940
        %v2134 = vld [vmem:[%s834] sm:$0x1]
        %v2135 = vld [vmem:[%s837] sm:$0x1]
        %v2136 = vsel %vm860, %v2132, 0.0
        %2137 = vadd.xlane.f32.xlu0 %v2136
        %v2138 = vpop.xlane.xlu0 %2137
        %v2139 = vsel %vm860, %v2133, 0.0
        %2140 = vadd.xlane.f32.xlu0 %v2139
        %v2141 = vpop.xlane.xlu0 %2140
        %v2142 = vmul.f32 %v2138, %v1904
        %v2143 = vmul.f32 %v2141, %v1904
        %v2144 = vsub.f32 %v2132, %v2142
        %v2145 = vsub.f32 %v2133, %v2143
        %v2146 = vmul.f32 %v2144, %v2144
        %v2147 = vmul.f32 %v2145, %v2145
        %v2148 = vsel %vm860, %v2146, 0.0
        %2149 = vadd.xlane.f32.xlu0 %v2148
        %v2150 = vpop.xlane.xlu0 %2149
        %v2151 = vsel %vm860, %v2147, 0.0
        %2152 = vadd.xlane.f32.xlu0 %v2151
        %v2153 = vpop.xlane.xlu0 %2152
        %v2154 = vmul.f32 %v2150, %v1904
        %v2155 = vmul.f32 %v2153, %v1904
        %v2156 = vadd.f32 %v2154, 1e-12
        %v2157 = vadd.f32 %v2155, 1e-12
        %v2158 = vrsqrt.pop %v2156
        %v2159 = vrsqrt.pop %v2157
        %v2160 = vmul.f32 %v2144, %v2158
        %v2161 = vmul.f32 %v2145, %v2159
        %v2163 = vlaneseq
        %v2164 = vshrl.u32 %v2163, 7
        %v2165 = vsub.s32 0, %v2164
        %v2166 = vrot.slane %v2134, %v2165
        %v2168 = vmul.f32 %v2160, %v2166
        %v2169 = vmul.f32 %v2161, %v2166
        %v2171 = vlaneseq
        %v2172 = vshrl.u32 %v2171, 7
        %v2173 = vsub.s32 0, %v2172
        %v2174 = vrot.slane %v2135, %v2173
        %v2176 = vadd.f32 %v2168, %v2174
        %v2177 = vadd.f32 %v2169, %v2174
        %2178 = vst.msk [vmem:[#allocation11] sm:$0xff] %vm860, %v2176
        %2179 = vst.msk [vmem:[#allocation11 + $0x8] sm:$0xff] %vm860, %v2177
        %p2180 = scmp.eq.s32.totalorder %s34, 1
        // Predicated region
        $region113: #{tpu_custom_call.1} parent=83 // pred_check
          %p2181 = pneg %p2180
        $region114: #{tpu_custom_call.1} parent=83 // pred_check_branch
          %2183 = sbr.rel (%p2181) target = $region116
        $region115: #{tpu_custom_call.1} parent=83 // pred_region
          %v2185 = vrot.slane %v2177, 7
          %vm2187 = vcmask 1040384
          %v2188 = vsel %vm2187, %v2176, %v2185
          %v2189 = vld [vmem:[%s14] sm:$0xff]
          %v2190 = vld [vmem:[%s14 + $0x8] sm:$0xff]
          %v2191 = vld [vmem:[%s14 + $0x10] sm:$0xff]
          %v2192 = vld [vmem:[%s14 + $0x18] sm:$0xff]
          %v2193 = vld [vmem:[%s15] sm:$0x1]
          %v2195 = vlaneseq
          %v2196 = vshrl.u32 %v2195, 7
          %v2197 = vsub.s32 0, %v2196
          %v2198 = vrot.slane %v2193, %v2197
          %v2201 = vsel %vm860, %v2188, 0
          %2203 = vmatprep.subr.mxu0 0.0
          %2204 = vmatpush1.msra.mxu0 %v2189
          %2205 = vmatprep.subr.mxu0 0.0
          %2206 = vmatpush1.msra.mxu0 %v2190
          %2207 = vmatprep.subr.mxu0 0.0
          %2208 = vmatpush1.msra.mxu0 %v2191
          %2209 = vmatprep.subr.mxu0 0.0
          %2210 = vmatpush1.msra.mxu0 %v2192
          %2211 = vmatprep.subr.mxu0 0.0
          %2212 = vmatpush1.msra.mxu0 0.0
          %2213 = vmatprep.subr.mxu0 0.0
          %2214 = vmatpush1.msra.mxu0 0.0
          %2215 = vmatprep.subr.mxu0 0.0
          %2216 = vmatpush1.msra.mxu0 0.0
          %2217 = vmatprep.subr.mxu0 0.0
          %2218 = vmatpush1.msra.mxu0 0.0
          %2219 = vmatprep.subr.mxu0 0.0
          %2220 = vmatpush1.msra.mxu0 0.0
          %2221 = vmatprep.subr.mxu0 0.0
          %2222 = vmatpush1.msra.mxu0 0.0
          %2223 = vmatprep.subr.mxu0 0.0
          %2224 = vmatpush1.msra.mxu0 0.0
          %2225 = vmatprep.subr.mxu0 0.0
          %2226 = vmatpush1.msra.mxu0 0.0
          %2227 = vmatprep.subr.mxu0 0.0
          %2228 = vmatpush1.msra.mxu0 0.0
          %2229 = vmatprep.subr.mxu0 0.0
          %2230 = vmatpush1.msra.mxu0 0.0
          %2231 = vmatprep.subr.mxu0 0.0
          %2232 = vmatpush1.msra.mxu0 0.0
          %2233 = vmatprep.subr.mxu0 0.0
          %2234 = vmatpush1.msra.mxu0 0.0
          %2235 = vmatprep.subr.mxu0 0.0
          %2236 = vmatpush1.msra.mxu0 0.0
          %2237 = vmatprep.subr.mxu0 0.0
          %2238 = vmatpush1.msra.mxu0 0.0
          %2239 = vmatprep.subr.mxu0 0.0
          %2240 = vmatpush1.msra.mxu0 0.0
          %2241 = vmatprep.subr.mxu0 0.0
          %2242 = vmatpush1.msra.mxu0 0.0
          %2243 = vmatprep.subr.mxu0 0.0
          %2244 = vmatpush1.msra.mxu0 0.0
          %2245 = vmatprep.subr.mxu0 0.0
          %2246 = vmatpush1.msra.mxu0 0.0
          %2247 = vmatprep.subr.mxu0 0.0
          %2248 = vmatpush1.msra.mxu0 0.0
          %2249 = vmatprep.subr.mxu0 0.0
          %2250 = vmatpush1.msra.mxu0 0.0
          %2251 = vmatprep.subr.mxu0 0.0
          %2252 = vmatpush1.msra.mxu0 0.0
          %2253 = vmatprep.subr.mxu0 0.0
          %2254 = vmatpush1.msra.mxu0 0.0
          %2255 = vmatprep.subr.mxu0 0.0
          %2256 = vmatpush1.msra.mxu0 0.0
          %2257 = vmatprep.subr.mxu0 0.0
          %2258 = vmatpush1.msra.mxu0 0.0
          %2259 = vmatprep.subr.mxu0 0.0
          %2260 = vmatpush1.msra.mxu0 0.0
          %2261 = vmatprep.subr.mxu0 0.0
          %2262 = vmatpush1.msra.mxu0 0.0
          %2263 = vmatprep.subr.mxu0 0.0
          %2264 = vmatpush1.msra.mxu0 0.0
          %2265 = vmatprep.subr.mxu0 0.0
          %2266 = vmatpush1.msra.mxu0 0.0
          %2267 = vmatprep.mubr.f32.mxu0 0.0
          %2268 = vmatmul.mubr.f32.gmra.mrb[0].mxu0 %v2201
          %v2269 = vpop.f32.mrb[0].mxu0
          %v2270 = vadd.f32 %v2198, %v2269
          %v2271 = vpop.f32.mrb[0].mxu0
          %2272 = vdwg.mxu0
          %v2273 = vtanh.pop %v2270
          %vm2274 = vcmask 254976
          %2275 = vst.msk [vmem:[#allocation12] sm:$0x3] %vm2274, %v2273
        $region116: #{tpu_custom_call.1} parent=83 // pred_fallthru
          _
        %s2276 = sand.u32 %s34, 1
        %s2277 = scalar_lea.sflag [#allocation4], %s2276
        %s2278 = sand.u32 %s480, 1
        %s2279 = smul.addr %s2278, 64
        %s2280 = scalar_lea.vmem [#allocation14], %s2279
        // Predicated region
        $region117: #{tpu_custom_call.1} parent=83 // pred_check
          %p2281 = pneg %p443
        $region118: #{tpu_custom_call.1} parent=83 // pred_check_branch
          %2283 = sbr.rel (%p2281) target = $region120
        $region119: #{tpu_custom_call.1} parent=83 // pred_region
          %s2285 = ssub.s32 256, 256
          %2286 = vsyncadd [#allocation4], %s2285
          %s2287 = sshll.u32 [#allocation11], 4
          %s2288 = int_to_ptr.vmem [resolvable:$true] %s2287
          %2293 = dma.vmem_to_hbm [thread:$0]  %s2288, 256, %s16, [#allocation4], 128, 128, 8
        $region120: #{tpu_custom_call.1} parent=83 // pred_fallthru
          _
        // Predicated region
        $region121: #{tpu_custom_call.1} parent=83 // pred_check
          %p2294 = pneg %p464
        $region122: #{tpu_custom_call.1} parent=83 // pred_check_branch
          %2296 = sbr.rel (%p2294) target = $region124
        $region123: #{tpu_custom_call.1} parent=83 // pred_region
          %s2298 = ssub.s32 32, 32
          %2299 = vsyncadd [#allocation13], %s2298
          %s2301 = sshll.u32 [#allocation12], 4
          %s2302 = int_to_ptr.vmem [resolvable:$true] %s2301
          %2304 = dma.vmem_to_hbm [thread:$0]  %s2302, 32, %s17, [#allocation13]
        $region124: #{tpu_custom_call.1} parent=83 // pred_fallthru
          _
        // Predicated region
        $region125: #{tpu_custom_call.1} parent=83 // pred_check
          %p2305 = pneg %p490
        $region126: #{tpu_custom_call.1} parent=83 // pred_check_branch
          %2307 = sbr.rel (%p2305) target = $region128
        $region127: #{tpu_custom_call.1} parent=83 // pred_region
          %s2309 = ssub.s32 1024, 1024
          %2310 = vsyncadd %s2277, %s2309
          %s2311 = smul.addr %s34, 8
          %s2312 = smul.addr %s2311, 128
          %s2313 = scalar_lea.hbm %s18, %s2312
          %s2314 = sshll.u32 %s2280, 4
          %s2315 = int_to_ptr.vmem [resolvable:$true] %s2314
          %2320 = dma.vmem_to_hbm [thread:$0]  %s2315, 1024, %s2313, %s2277, 128, 128, 8
        $region128: #{tpu_custom_call.1} parent=83 // pred_fallthru
          _
        // Predicated region
        $region129: #{tpu_custom_call.1} parent=83 // pred_check
          %p2321 = pneg %p443
        $region130: #{tpu_custom_call.1} parent=83 // pred_check_branch
          %2323 = sbr.rel (%p2321) target = $region132
        $region131: #{tpu_custom_call.1} parent=83 // pred_region
          %2324 = dma.done [#allocation4], 256
        $region132: #{tpu_custom_call.1} parent=83 // pred_fallthru
          _
        // Predicated region
        $region133: #{tpu_custom_call.1} parent=83 // pred_check
          %p2325 = pneg %p464
        $region134: #{tpu_custom_call.1} parent=83 // pred_check_branch
          %2327 = sbr.rel (%p2325) target = $region136
        $region135: #{tpu_custom_call.1} parent=83 // pred_region
          %2328 = dma.done [#allocation13], 32
        $region136: #{tpu_custom_call.1} parent=83 // pred_fallthru
          _
      $region84: #{tpu_custom_call.1} parent=5 // pred_fallthru
        _
      %p2329 = scmp.le.s32.totalorder 2, %s29
      // Predicated region
      $region137: #{tpu_custom_call.1} parent=5 // pred_check
        %p2330 = pneg %p2329
      $region138: #{tpu_custom_call.1} parent=5 // pred_check_branch
        %2332 = sbr.rel (%p2330) target = $region140
      $region139: #{tpu_custom_call.1} parent=5 // pred_region
        %s2333 = ssub.s32 %s29, 2
        // Predicated region
        $region141: #{tpu_custom_call.1} parent=139 // pred_check
          %p2334 = pneg %p496
        $region142: #{tpu_custom_call.1} parent=139 // pred_check_branch
          %2336 = sbr.rel (%p2334) target = $region144
        $region143: #{tpu_custom_call.1} parent=139 // pred_region
          %s2337 = sand.u32 %s35, 1
          %s2338 = scalar_lea.sflag [#allocation4], %s2337
          %s2339 = sand.u32 %s481, 1
          %s2340 = smul.addr %s2339, 64
          %s2341 = scalar_lea.vmem [#allocation14], %s2340
          %2342 = dma.done %s2338, 1024
        $region144: #{tpu_custom_call.1} parent=139 // pred_fallthru
          _
      $region140: #{tpu_custom_call.1} parent=5 // pred_fallthru
        _
    $region6: #{tpu_custom_call.1} parent=1 // loop_footer
      %s33 = sadd.s32 1, %s29
    $region7: #{tpu_custom_call.1} parent=1 // loop_footer_branch
      %28 = sbr.rel target = $region3
    $region8: #{tpu_custom_call.1} parent=1 // loop_exit
      _
    %2343 = vsyncpa [#allocation3], 1
    %s2344 = scalar_lea.sflag [#allocation3], 1
    %2345 = vsyncpa %s2344, 1
    %2346 = vsyncpa [#allocation6], 1
    %2347 = vsyncpa [#allocation4], 1
    %s2348 = scalar_lea.sflag [#allocation4], 1
    %2349 = vsyncpa %s2348, 1
    %2350 = vsyncpa [#allocation13], 1

</llo_original>
